<compile_context>
chip_gen: v6e
topology: v6e:2x2x1
jax: 0.10.0
libtpu: 0.0.40
codegen_flags: <defaults>
</compile_context>

<pallas_src>
import functools

import jax
import jax.numpy as jnp
from jax import lax
from jax.experimental import pallas as pl
from jax.experimental.pallas import tpu as pltpu

EPS = 1e-15
SELU_ALPHA = 1.6732632423543772
SELU_SCALE = 1.0507009873554805

_LANE = 128


def _round_up(x, m):
    return ((x + m - 1) // m) * m


def _buf_bytes(rows, cols, itemsize):
    # Conservative VMEM footprint of one (rows, cols) buffer under TPU tiling.
    return _round_up(max(rows, 1), 16) * _round_up(max(cols, 1), _LANE) * itemsize


def _dmon_kernel(x_ref, adj_ref, w_ref, b_ref,
                 s_ref, out_ref, adj_out_ref, loss_ref,
                 s_bf_ref, acc_ref, *, k, kp, f, n, tn, ragged):
    """Per-(batch, adjacency-row-tile) body.  Grid = (B, cdiv(N, tn))."""
    nt = pl.program_id(1)
    lane = lax.broadcasted_iota(jnp.int32, (1, kp), 1)   # cluster index along lanes
    row = lax.broadcasted_iota(jnp.int32, (kp, 1), 0)

    # ---- per-batch init: assignments, pooled features, adjacency-free losses --
    @pl.when(nt == 0)
    def _init():
        xm = x_ref[...]                                   # (n_srow, F+1) f32
        mask_col = xm[:, f:f + 1]                         # (n_srow, 1) — mask column
        # Single Linear (exponent folded into w/b; w row `f` is zero so the
        # mask column does not perturb the logits) + masked softmax.
        logits = jnp.dot(xm, w_ref[...],
                         preferred_element_type=jnp.float32) + b_ref[...]
        logits = jnp.where(lane < k, logits, -1e30)       # kill padded clusters
        lmax = jnp.max(logits, axis=-1, keepdims=True)
        e = jnp.exp(logits - lmax)
        denom = jnp.sum(e, axis=-1, keepdims=True)
        # full-precision reciprocal: rows of S must sum to 1 (used for 2m below)
        s_m = (e * pl.reciprocal(denom, approx=False)) * mask_col   # (n_srow, Kp)
        s_ref[...] = s_m
        # bf16 copy (first N rows only) feeding the A @ S hot loop; spare column
        # `k` is all-ones so the adjacency row-sums (degrees) come out of the
        # same MXU pass.
        s_bf_ref[...] = jnp.where(lane == k, 1.0, s_m[:n, :]).astype(jnp.bfloat16)

        # pooled node features: selu(S^T (X * mask)); the extra mask column of
        # xm produces one junk output column, sliced off on the host.
        x_masked = xm * mask_col
        pooled = lax.dot_general(s_m, x_masked, (((0,), (0,)), ((), ())),
                                 preferred_element_type=jnp.float32)  # (Kp, F+1)
        pooled = SELU_SCALE * jnp.where(pooled > 0.0, pooled,
                                        SELU_ALPHA * (jnp.exp(pooled) - 1.0))
        out_ref[...] = pooled

        # orthogonality loss (adjacency-free)
        ss = lax.dot_general(s_m, s_m, (((0,), (0,)), ((), ())),
                             preferred_element_type=jnp.float32)      # (Kp, Kp)
        ss_fro = jnp.sqrt(jnp.sum(ss * ss))
        eye_k = ((row == lane) & (row < k)).astype(jnp.float32)
        diff = ss * (1.0 / ss_fro) - eye_k * (1.0 / (k ** 0.5))
        ortho = jnp.sqrt(jnp.sum(diff * diff))

        # cluster-size loss (adjacency-free); matches the reference (no "-1").
        cluster_size = jnp.sum(s_m, axis=0, keepdims=True)            # (1, Kp)
        n_valid = jnp.sum(mask_col)
        cluster = (jnp.sqrt(jnp.sum(cluster_size * cluster_size))
                   * (1.0 / n_valid) * (k ** 0.5))

        # ortho/cluster stashed in lanes 1/2 of the resident loss output;
        # lane 0 (spectral) is added at the last row-tile.
        loss_ref[...] = (jnp.where(lane == 1, ortho, 0.0)
                         + jnp.where(lane == 2, cluster, 0.0))

        acc_ref[...] = jnp.zeros_like(acc_ref)

    # ---- hot loop: one adjacency row-tile, streamed in the caller's dtype ----
    a_tile = adj_ref[...].astype(jnp.bfloat16)            # (tn, N) bf16
    # A[rows, :] @ [S | 1] -> columns 0..k-1 are A S, column k is the row degree
    # (degrees are row sums over ALL supplied columns, as in the reference).
    a_s = jnp.dot(a_tile, s_bf_ref[...],
                  preferred_element_type=jnp.float32)      # (tn, Kp) f32
    if ragged:
        # last row-tile overruns N: zero the undefined tail rows (clean zeros
        # from where() so even NaN/Inf garbage cannot leak into the reduction).
        rid = lax.broadcasted_iota(jnp.int32, (tn, 1), 0) + nt * tn
        a_s = jnp.where(rid < n, a_s, 0.0)
    start = nt * tn
    if tn % 8 == 0:
        start = pl.multiple_of(start, 8)
    s_tile = s_ref[pl.ds(start, tn), :]                    # (tn, Kp) f32 (resident out)
    # S[rows]^T @ (A[rows, :] [S | 1]); column k accumulates ca = S^T deg.
    acc_ref[...] += lax.dot_general(s_tile, a_s, (((0,), (0,)), ((), ())),
                                    preferred_element_type=jnp.float32)

    # ---- per-batch finalize: modularity loss + normalized coarse adjacency ---
    @pl.when(nt == pl.num_programs(1) - 1)
    def _finalize():
        acc = acc_ref[...]                                 # (Kp, Kp)
        ca = acc[:, k:k + 1]                               # (Kp, 1) = S_m^T deg
        # rows of S sum to 1 on valid nodes -> sum(ca) == sum(mask * deg) == 2m
        two_m = jnp.sum(ca)
        inv_two_m = 1.0 / two_m        # no eps guard: matches the reference
        eye_k = ((row == lane) & (row < k)).astype(jnp.float32)
        col_valid = (lane < k).astype(jnp.float32)
        out_adj = acc * col_valid                          # drop degree / pad cols

        # spectral loss: -(tr(S^T A S) - tr((S^T d)(d^T S)) / (2m)) / (2m)
        tr_out = jnp.sum(out_adj * eye_k)
        tr_norm = jnp.sum(ca * ca) * inv_two_m
        spectral = -(tr_out - tr_norm) * inv_two_m

        # zero the diagonal, then symmetric sqrt-degree normalization (as in ref)
        out_adj = out_adj * (1.0 - eye_k)
        d = jnp.sqrt(jnp.sum(out_adj, axis=-1, keepdims=True)) + EPS  # (Kp, 1)
        inv_d = pl.reciprocal(d, approx=False)
        adj_out_ref[...] = out_adj * inv_d * jnp.transpose(inv_d)

        loss_ref[...] = loss_ref[...] + jnp.where(lane == 0, spectral, 0.0)


def _vmem_budget_bytes():
    """Generation-aware scoped-VMEM budget with headroom for compiler scratch."""
    try:
        cap = int(getattr(pltpu.get_tpu_info(), "vmem_capacity_bytes",
                          64 * 2 ** 20))
    except Exception:
        cap = 64 * 2 ** 20                  # conservative: safe on v5e/v6e/v7x
    return cap, max(32 * 2 ** 20, min(cap - 16 * 2 ** 20, int(cap * 0.85)))


def dmon_pooling(x, adj, w, b, mask=None, exponent=1.0):
    """JAX/Pallas equivalent of DMoNPooling.forward (single-Linear MLP).

    Returns (s, out, out_adj, spectral_loss, ortho_loss, cluster_loss).
    """
    x = jnp.asarray(x, jnp.float32)
    B, N, F = x.shape
    K = int(w.shape[1])

    adj = jnp.asarray(adj)
    if adj.dtype not in (jnp.bfloat16, jnp.float32):
        adj = adj.astype(jnp.float32)       # stream the hot N^2 array as-is otherwise

    if mask is None:
        mask = jnp.ones((B, N), dtype=jnp.float32)
    mask = jnp.asarray(mask, jnp.float32)

    kp = _round_up(K + 1, _LANE)            # lane-dense clusters + spare degree column
    fx = F + 1                              # mask folded into x as an extra column

    # --- VMEM-budget-driven adjacency row-tile --------------------------------
    cap, budget = _vmem_budget_bytes()
    adj_isz = jnp.dtype(adj.dtype).itemsize
    n_est = _round_up(N, 16)
    n_lanes = _round_up(N, _LANE)
    resident = (2 * _buf_bytes(n_est, fx, 4)        # x (+mask column), double-buffered
                + 2 * _buf_bytes(fx, kp, 4)         # w
                + 2 * _buf_bytes(1, kp, 4)          # b
                + 2 * _buf_bytes(n_est, kp, 4)      # S output (resident per batch)
                + 2 * _buf_bytes(kp, fx, 4)         # pooled output
                + 2 * _buf_bytes(kp, kp, 4)         # coarse adjacency output
                + 2 * _buf_bytes(1, kp, 4)          # losses output
                + _buf_bytes(N, kp, 2)              # bf16 S scratch
                + _buf_bytes(kp, kp, 4)             # accumulator scratch
                + 3 * _buf_bytes(n_est, kp, 4))     # init-phase temporaries slack
    row_cost = (2 * n_lanes * adj_isz               # adjacency tile, double-buffered
                + n_lanes * 2                       # in-kernel bf16 cast temporary
                + 2 * (_round_up(fx, _LANE) + kp) * 4)  # ragged extra x / S rows
    tn = (max(budget - resident, 0) // row_cost) // 16 * 16
    tn = max(16, int(tn))
    if tn >= N:
        tn = N                                      # one full tile, no raggedness
    n_tiles = -(-N // tn)
    n_srow = n_tiles * tn
    ragged = (n_srow != N)

    need = (resident + 2 * _buf_bytes(tn, N, adj_isz) + _buf_bytes(tn, N, 2))
    vmem_limit = int(max(32 * 2 ** 20, need + need // 4 + (4 << 20)))
    vmem_limit = int(max(16 * 2 ** 20, min(vmem_limit, cap - (4 << 20))))

    # --- host-side prep: O(N*F) only; the O(N^2) adjacency is untouched --------
    xm = jnp.concatenate([x, mask[:, :, None]], axis=-1)            # (B, N, F+1)
    if n_srow != N:
        xm = jnp.pad(xm, ((0, 0), (0, n_srow - N), (0, 0)))
    w_p = jnp.zeros((fx, kp), jnp.float32).at[:F, :K].set(
        jnp.asarray(w, jnp.float32) * exponent)                     # mask row stays 0
    b_p = jnp.zeros((1, kp), jnp.float32).at[0, :K].set(
        jnp.asarray(b, jnp.float32).reshape(-1) * exponent)

    kernel = functools.partial(_dmon_kernel, k=K, kp=kp, f=F, n=N, tn=tn,
                               ragged=ragged)

    s_p, out_p, adj_out_p, losses = pl.pallas_call(
        kernel,
        out_shape=(
            jax.ShapeDtypeStruct((B, n_srow, kp), jnp.float32),  # S (padded)
            jax.ShapeDtypeStruct((B, kp, fx), jnp.float32),      # pooled (+1 junk col)
            jax.ShapeDtypeStruct((B, kp, kp), jnp.float32),      # coarse adjacency
            jax.ShapeDtypeStruct((B, 1, kp), jnp.float32),       # [spectral, ortho, cluster]
        ),
        grid_spec=pltpu.PrefetchScalarGridSpec(
            num_scalar_prefetch=0,
            grid=(B, n_tiles),
            in_specs=[
                pl.BlockSpec((None, n_srow, fx), lambda i, t: (i, 0, 0)),
                pl.BlockSpec((None, tn, N), lambda i, t: (i, t, 0)),
                pl.BlockSpec((fx, kp), lambda i, t: (0, 0)),
                pl.BlockSpec((1, kp), lambda i, t: (0, 0)),
            ],
            out_specs=[
                pl.BlockSpec((None, n_srow, kp), lambda i, t: (i, 0, 0)),
                pl.BlockSpec((None, kp, fx), lambda i, t: (i, 0, 0)),
                pl.BlockSpec((None, kp, kp), lambda i, t: (i, 0, 0)),
                pl.BlockSpec((None, 1, kp), lambda i, t: (i, 0, 0)),
            ],
            scratch_shapes=[
                pltpu.VMEM((N, kp), jnp.bfloat16),   # S (+ ones degree column)
                pltpu.VMEM((kp, kp), jnp.float32),   # S^T [A S | deg] accumulator
            ],
        ),
        compiler_params=pltpu.CompilerParams(
            dimension_semantics=("parallel", "arbitrary"),
            vmem_limit_bytes=vmem_limit),
    )(xm, adj, w_p, b_p)

    s = s_p[:, :N, :K]
    out = out_p[:, :K, :F]
    out_adj = adj_out_p[:, :K, :K]
    spectral_loss = jnp.mean(losses[:, 0, 0])
    ortho_loss = jnp.mean(losses[:, 0, 1])
    cluster_loss = jnp.mean(losses[:, 0, 2])
    return s, out, out_adj, spectral_loss, ortho_loss, cluster_loss


if __name__ == "__main__":
    # Small shapes implied by the forward: B=2 graphs, N=16 nodes,
    # F=32 features, K=8 clusters.
    B, N, F, K = 2, 16, 32, 8
    key = jax.random.PRNGKey(0)
    kx, ka, kw, kb = jax.random.split(key, 4)

    x = jax.random.normal(kx, (B, N, F), dtype=jnp.float32)
    a = jax.random.uniform(ka, (B, N, N), dtype=jnp.float32)
    adj = (a + jnp.swapaxes(a, 1, 2)) * 0.5          # symmetric, non-negative

    # Deterministic parameter init for the single Linear(F, K) inside the MLP.
    bound = 1.0 / (F ** 0.5)
    w = jax.random.uniform(kw, (F, K), minval=-bound, maxval=bound,
                           dtype=jnp.float32)
    bias = jax.random.uniform(kb, (K,), minval=-bound, maxval=bound,
                              dtype=jnp.float32)

    outs = dmon_pooling(x, adj, w, bias, mask=None, exponent=1.0)
    jax.block_until_ready(outs)
    print("KERNEL_OK")
</pallas_src>

<mosaic_0001>
module attributes {stable_mosaic.version = 11 : i64} {
  func.func @_dmon_kernel(%arg0: i32, %arg1: i32, %arg2: memref<1x16x33xf32, #tpu.memory_space<vmem>>, %arg3: memref<1x16x16xf32, #tpu.memory_space<vmem>>, %arg4: memref<33x128xf32, #tpu.memory_space<vmem>>, %arg5: memref<1x128xf32, #tpu.memory_space<vmem>>, %arg6: memref<1x16x128xf32, #tpu.memory_space<vmem>>, %arg7: memref<1x128x33xf32, #tpu.memory_space<vmem>>, %arg8: memref<1x128x128xf32, #tpu.memory_space<vmem>>, %arg9: memref<1x1x128xf32, #tpu.memory_space<vmem>>, %arg10: memref<16x128xbf16, #tpu.memory_space<vmem>>, %arg11: memref<128x128xf32, #tpu.memory_space<vmem>>) attributes {dimension_semantics = [#tpu.dimension_semantics<parallel>, #tpu.dimension_semantics<arbitrary>], iteration_bounds = array<i64: 2, 1>, scalar_prefetch = 0 : i64, scratch_operands = 2 : i64, tpu.core_type = #tpu.core_type<tc>, window_params = [{transform_indices = @transform_0, window_bounds = array<i64: 1, 16, 33>}, {transform_indices = @transform_1, window_bounds = array<i64: 1, 16, 16>}, {pipeline_mode = #tpu.pipeline_mode<synchronous>, transform_indices = @transform_2, window_bounds = array<i64: 33, 128>}, {pipeline_mode = #tpu.pipeline_mode<synchronous>, transform_indices = @transform_3, window_bounds = array<i64: 1, 128>}, {transform_indices = @transform_4, window_bounds = array<i64: 1, 16, 128>}, {transform_indices = @transform_5, window_bounds = array<i64: 1, 128, 33>}, {transform_indices = @transform_6, window_bounds = array<i64: 1, 128, 128>}, {transform_indices = @transform_7, window_bounds = array<i64: 1, 1, 128>}]} {
    %0 = tpu.iota {dimensions = array<i32: 1>} : vector<1x128xi32>
    %1 = tpu.iota {dimensions = array<i32: 0>} : vector<128x1xi32>
    %c0_i32 = arith.constant 0 : i32
    %2 = arith.cmpi eq, %arg1, %c0_i32 : i32
    %3 = arith.extui %2 : i1 to i32
    %c0_i32_0 = arith.constant 0 : i32
    %4 = arith.cmpi ne, %3, %c0_i32_0 : i32
    scf.if %4 {
      %c0_14 = arith.constant 0 : index
      %c0_15 = arith.constant 0 : index
      %c0_16 = arith.constant 0 : index
      %22 = vector.load %arg2[%c0_14, %c0_15, %c0_16] : memref<1x16x33xf32, #tpu.memory_space<vmem>>, vector<1x16x33xf32>
      %23 = vector.shape_cast %22 : vector<1x16x33xf32> to vector<16x33xf32>
      %24 = vector.extract_strided_slice %23 {offsets = [0, 32], sizes = [16, 1], strides = [1, 1]} : vector<16x33xf32> to vector<16x1xf32>
      %c0_17 = arith.constant 0 : index
      %c0_18 = arith.constant 0 : index
      %25 = vector.load %arg4[%c0_17, %c0_18] : memref<33x128xf32, #tpu.memory_space<vmem>>, vector<33x128xf32>
      %cst_19 = arith.constant dense<0.000000e+00> : vector<16x128xf32>
      %26 = tpu.matmul %23, %25, %cst_19 {dimension_numbers = #tpu.dot_dimension_numbers<[1], [0], [0], [1], [0, 0, 1, 1], [], []>} : vector<16x33xf32>, vector<33x128xf32>, vector<16x128xf32> -> vector<16x128xf32>
      %c0_20 = arith.constant 0 : index
      %c0_21 = arith.constant 0 : index
      %27 = vector.load %arg5[%c0_20, %c0_21] : memref<1x128xf32, #tpu.memory_space<vmem>>, vector<1x128xf32>
      %28 = vector.broadcast %27 : vector<1x128xf32> to vector<16x128xf32>
      %29 = arith.addf %26, %28 : vector<16x128xf32>
      %c8_i32 = arith.constant 8 : i32
      %30 = vector.broadcast %c8_i32 : i32 to vector<1x128xi32>
      %31 = arith.cmpi slt, %0, %30 : vector<1x128xi32>
      %cst_22 = arith.constant -1.000000e+30 : f32
      %32 = vector.shape_cast %31 : vector<1x128xi1> to vector<1x128xi1>
      %33 = vector.broadcast %32 : vector<1x128xi1> to vector<16x128xi1>
      %34 = vector.broadcast %cst_22 : f32 to vector<16x128xf32>
      %35 = arith.select %33, %29, %34 : vector<16x128xi1>, vector<16x128xf32>
      %cst_23 = arith.constant dense<0xFF800000> : vector<16xf32>
      %36 = vector.multi_reduction <maximumf>, %35, %cst_23 [1] : vector<16x128xf32> to vector<16xf32>
      %37 = vector.shape_cast %36 : vector<16xf32> to vector<16x1xf32>
      %38 = vector.broadcast %37 : vector<16x1xf32> to vector<16x128xf32>
      %39 = arith.subf %35, %38 : vector<16x128xf32>
      %40 = math.exp %39 : vector<16x128xf32>
      %cst_24 = arith.constant dense<0.000000e+00> : vector<16xf32>
      %41 = vector.multi_reduction <add>, %40, %cst_24 [1] : vector<16x128xf32> to vector<16xf32>
      %42 = vector.shape_cast %41 : vector<16xf32> to vector<16x1xf32>
      %43 = tpu.reciprocal %42 : vector<16x1xf32> -> vector<16x1xf32>
      %44 = vector.broadcast %43 : vector<16x1xf32> to vector<16x128xf32>
      %45 = arith.mulf %40, %44 : vector<16x128xf32>
      %46 = vector.broadcast %24 : vector<16x1xf32> to vector<16x128xf32>
      %47 = arith.mulf %45, %46 : vector<16x128xf32>
      %c0_25 = arith.constant 0 : index
      %c0_26 = arith.constant 0 : index
      %c0_27 = arith.constant 0 : index
      %48 = vector.load %arg6[%c0_25, %c0_26, %c0_27] : memref<1x16x128xf32, #tpu.memory_space<vmem>>, vector<1x16x128xf32>
      %49 = vector.shape_cast %48 : vector<1x16x128xf32> to vector<16x128xf32>
      %50 = vector.shape_cast %47 : vector<16x128xf32> to vector<1x16x128xf32>
      tpu.vector_store %arg6[%c0_25, %c0_26, %c0_27], %50 {strides = array<i32>} : memref<1x16x128xf32, #tpu.memory_space<vmem>>, vector<1x16x128xf32>,
      %c8_i32_28 = arith.constant 8 : i32
      %51 = vector.broadcast %c8_i32_28 : i32 to vector<1x128xi32>
      %52 = arith.cmpi eq, %0, %51 : vector<1x128xi32>
      %cst_29 = arith.constant 1.000000e+00 : f32
      %53 = vector.shape_cast %52 : vector<1x128xi1> to vector<1x128xi1>
      %54 = vector.broadcast %53 : vector<1x128xi1> to vector<16x128xi1>
      %55 = vector.broadcast %cst_29 : f32 to vector<16x128xf32>
      %56 = arith.select %54, %55, %47 : vector<16x128xi1>, vector<16x128xf32>
      %57 = arith.truncf %56 : vector<16x128xf32> to vector<16x128xbf16>
      %c0_30 = arith.constant 0 : index
      %c0_31 = arith.constant 0 : index
      %58 = vector.load %arg10[%c0_30, %c0_31] : memref<16x128xbf16, #tpu.memory_space<vmem>>, vector<16x128xbf16>
      tpu.vector_store %arg10[%c0_30, %c0_31], %57 {strides = array<i32>} : memref<16x128xbf16, #tpu.memory_space<vmem>>, vector<16x128xbf16>,
      %59 = vector.broadcast %24 : vector<16x1xf32> to vector<16x33xf32>
      %60 = arith.mulf %23, %59 : vector<16x33xf32>
      %cst_32 = arith.constant dense<0.000000e+00> : vector<128x33xf32>
      %61 = tpu.matmul %47, %60, %cst_32 {dimension_numbers = #tpu.dot_dimension_numbers<[0], [0], [1], [1], [0, 1, 1, 1], [], []>} : vector<16x128xf32>, vector<16x33xf32>, vector<128x33xf32> -> vector<128x33xf32>
      %cst_33 = arith.constant 0.000000e+00 : f32
      %62 = vector.broadcast %cst_33 : f32 to vector<128x33xf32>
      %63 = arith.cmpf ogt, %61, %62 : vector<128x33xf32>
      %64 = math.exp %61 : vector<128x33xf32>
      %cst_34 = arith.constant 1.000000e+00 : f32
      %65 = vector.broadcast %cst_34 : f32 to vector<128x33xf32>
      %66 = arith.subf %64, %65 : vector<128x33xf32>
      %cst_35 = arith.constant 1.67326319 : f32
      %67 = vector.broadcast %cst_35 : f32 to vector<128x33xf32>
      %68 = arith.mulf %67, %66 : vector<128x33xf32>
      %69 = arith.select %63, %61, %68 : vector<128x33xi1>, vector<128x33xf32>
      %cst_36 = arith.constant 1.05070102 : f32
      %70 = vector.broadcast %cst_36 : f32 to vector<128x33xf32>
      %71 = arith.mulf %70, %69 : vector<128x33xf32>
      %c0_37 = arith.constant 0 : index
      %c0_38 = arith.constant 0 : index
      %c0_39 = arith.constant 0 : index
      %72 = vector.load %arg7[%c0_37, %c0_38, %c0_39] : memref<1x128x33xf32, #tpu.memory_space<vmem>>, vector<1x128x33xf32>
      %73 = vector.shape_cast %72 : vector<1x128x33xf32> to vector<128x33xf32>
      %74 = vector.shape_cast %71 : vector<128x33xf32> to vector<1x128x33xf32>
      tpu.vector_store %arg7[%c0_37, %c0_38, %c0_39], %74 {strides = array<i32>} : memref<1x128x33xf32, #tpu.memory_space<vmem>>, vector<1x128x33xf32>,
      %cst_40 = arith.constant dense<0.000000e+00> : vector<128x128xf32>
      %75 = tpu.matmul %47, %47, %cst_40 {dimension_numbers = #tpu.dot_dimension_numbers<[0], [0], [1], [1], [0, 1, 1, 1], [], []>} : vector<16x128xf32>, vector<16x128xf32>, vector<128x128xf32> -> vector<128x128xf32>
      %76 = arith.mulf %75, %75 : vector<128x128xf32>
      %77 = vector.shape_cast %76 : vector<128x128xf32> to vector<1x128x128xf32>
      %cst_41 = arith.constant dense<0.000000e+00> : vector<1xf32>
      %78 = vector.multi_reduction <add>, %77, %cst_41 [1, 2] : vector<1x128x128xf32> to vector<1xf32>
      %79 = vector.shape_cast %78 : vector<1xf32> to vector<1x1x1xf32>
      %80 = vector.extract %79[0, 0, 0] : f32 from vector<1x1x1xf32>
      %81 = math.sqrt %80 : f32
      %82 = vector.broadcast %1 : vector<128x1xi32> to vector<128x128xi32>
      %83 = vector.broadcast %0 : vector<1x128xi32> to vector<128x128xi32>
      %84 = arith.cmpi eq, %82, %83 : vector<128x128xi32>
      %c8_i32_42 = arith.constant 8 : i32
      %85 = vector.broadcast %c8_i32_42 : i32 to vector<128x1xi32>
      %86 = arith.cmpi slt, %1, %85 : vector<128x1xi32>
      %87 = vector.broadcast %86 : vector<128x1xi1> to vector<128x128xi1>
      %88 = arith.andi %84, %87 : vector<128x128xi1>
      %89 = arith.extui %88 : vector<128x128xi1> to vector<128x128xi32>
      %90 = arith.sitofp %89 : vector<128x128xi32> to vector<128x128xf32>
      %cst_43 = arith.constant 1.000000e+00 : f32
      %91 = arith.divf %cst_43, %81 : f32
      %92 = vector.broadcast %91 : f32 to vector<128x128xf32>
      %93 = arith.mulf %75, %92 : vector<128x128xf32>
      %cst_44 = arith.constant 0.353553385 : f32
      %94 = vector.broadcast %cst_44 : f32 to vector<128x128xf32>
      %95 = arith.mulf %90, %94 : vector<128x128xf32>
      %96 = arith.subf %93, %95 : vector<128x128xf32>
      %97 = arith.mulf %96, %96 : vector<128x128xf32>
      %98 = vector.shape_cast %97 : vector<128x128xf32> to vector<1x128x128xf32>
      %cst_45 = arith.constant dense<0.000000e+00> : vector<1xf32>
      %99 = vector.multi_reduction <add>, %98, %cst_45 [1, 2] : vector<1x128x128xf32> to vector<1xf32>
      %100 = vector.shape_cast %99 : vector<1xf32> to vector<1x1x1xf32>
      %101 = vector.extract %100[0, 0, 0] : f32 from vector<1x1x1xf32>
      %102 = math.sqrt %101 : f32
      %cst_46 = arith.constant dense<0.000000e+00> : vector<128xf32>
      %103 = vector.multi_reduction <add>, %47, %cst_46 [0] : vector<16x128xf32> to vector<128xf32>
      %104 = vector.shape_cast %103 : vector<128xf32> to vector<1x128xf32>
      %105 = vector.shape_cast %24 : vector<16x1xf32> to vector<1x16x1xf32>
      %cst_47 = arith.constant dense<0.000000e+00> : vector<1xf32>
      %106 = vector.multi_reduction <add>, %105, %cst_47 [1, 2] : vector<1x16x1xf32> to vector<1xf32>
      %107 = vector.shape_cast %106 : vector<1xf32> to vector<1x1x1xf32>
      %108 = vector.extract %107[0, 0, 0] : f32 from vector<1x1x1xf32>
      %109 = arith.mulf %104, %104 : vector<1x128xf32>
      %110 = vector.shape_cast %109 : vector<1x128xf32> to vector<1x1x128xf32>
      %cst_48 = arith.constant dense<0.000000e+00> : vector<1xf32>
      %111 = vector.multi_reduction <add>, %110, %cst_48 [1, 2] : vector<1x1x128xf32> to vector<1xf32>
      %112 = vector.shape_cast %111 : vector<1xf32> to vector<1x1x1xf32>
      %113 = vector.extract %112[0, 0, 0] : f32 from vector<1x1x1xf32>
      %114 = math.sqrt %113 : f32
      %cst_49 = arith.constant 1.000000e+00 : f32
      %115 = arith.divf %cst_49, %108 : f32
      %116 = arith.mulf %114, %115 : f32
      %cst_50 = arith.constant 2.82842708 : f32
      %117 = arith.mulf %116, %cst_50 : f32
      %c1_i32 = arith.constant 1 : i32
      %118 = vector.broadcast %c1_i32 : i32 to vector<1x128xi32>
      %119 = arith.cmpi eq, %0, %118 : vector<1x128xi32>
      %cst_51 = arith.constant 0.000000e+00 : f32
      %120 = vector.broadcast %102 : f32 to vector<1x128xf32>
      %121 = vector.broadcast %cst_51 : f32 to vector<1x128xf32>
      %122 = arith.select %119, %120, %121 : vector<1x128xi1>, vector<1x128xf32>
      %c2_i32 = arith.constant 2 : i32
      %123 = vector.broadcast %c2_i32 : i32 to vector<1x128xi32>
      %124 = arith.cmpi eq, %0, %123 : vector<1x128xi32>
      %cst_52 = arith.constant 0.000000e+00 : f32
      %125 = vector.broadcast %117 : f32 to vector<1x128xf32>
      %126 = vector.broadcast %cst_52 : f32 to vector<1x128xf32>
      %127 = arith.select %124, %125, %126 : vector<1x128xi1>, vector<1x128xf32>
      %128 = arith.addf %122, %127 : vector<1x128xf32>
      %c0_53 = arith.constant 0 : index
      %c0_54 = arith.constant 0 : index
      %c0_55 = arith.constant 0 : index
      %129 = vector.load %arg9[%c0_53, %c0_54, %c0_55] : memref<1x1x128xf32, #tpu.memory_space<vmem>>, vector<1x1x128xf32>
      %130 = vector.shape_cast %129 : vector<1x1x128xf32> to vector<1x128xf32>
      %131 = vector.shape_cast %128 : vector<1x128xf32> to vector<1x1x128xf32>
      tpu.vector_store %arg9[%c0_53, %c0_54, %c0_55], %131 {strides = array<i32>} : memref<1x1x128xf32, #tpu.memory_space<vmem>>, vector<1x1x128xf32>,
      %cst_56 = arith.constant 0.000000e+00 : f32
      %132 = vector.broadcast %cst_56 : f32 to vector<128x128xf32>
      %c0_57 = arith.constant 0 : index
      %c0_58 = arith.constant 0 : index
      %133 = vector.load %arg11[%c0_57, %c0_58] : memref<128x128xf32, #tpu.memory_space<vmem>>, vector<128x128xf32>
      tpu.vector_store %arg11[%c0_57, %c0_58], %132 {strides = array<i32>} : memref<128x128xf32, #tpu.memory_space<vmem>>, vector<128x128xf32>,
    } else {
    }
    %c0 = arith.constant 0 : index
    %c0_1 = arith.constant 0 : index
    %c0_2 = arith.constant 0 : index
    %5 = vector.load %arg3[%c0, %c0_1, %c0_2] : memref<1x16x16xf32, #tpu.memory_space<vmem>>, vector<1x16x16xf32>
    %6 = vector.shape_cast %5 : vector<1x16x16xf32> to vector<16x16xf32>
    %7 = arith.truncf %6 : vector<16x16xf32> to vector<16x16xbf16>
    %c0_3 = arith.constant 0 : index
    %c0_4 = arith.constant 0 : index
    %8 = vector.load %arg10[%c0_3, %c0_4] : memref<16x128xbf16, #tpu.memory_space<vmem>>, vector<16x128xbf16>
    %cst = arith.constant dense<0.000000e+00> : vector<16x128xf32>
    %9 = tpu.matmul %7, %8, %cst {dimension_numbers = #tpu.dot_dimension_numbers<[1], [0], [0], [1], [0, 0, 1, 1], [], []>} : vector<16x16xbf16>, vector<16x128xbf16>, vector<16x128xf32> -> vector<16x128xf32>
    %c16_i32 = arith.constant 16 : i32
    %10 = arith.muli %arg1, %c16_i32 : i32
    %11 = tpu.assume_multiple %10, 8 : i32
    %c0_5 = arith.constant 0 : index
    %12 = arith.index_cast %11 : i32 to index
    %c0_6 = arith.constant 0 : index
    %13 = vector.load %arg6[%c0_5, %12, %c0_6] : memref<1x16x128xf32, #tpu.memory_space<vmem>>, vector<1x16x128xf32>
    %14 = vector.shape_cast %13 : vector<1x16x128xf32> to vector<16x128xf32>
    %c0_7 = arith.constant 0 : index
    %c0_8 = arith.constant 0 : index
    %15 = vector.load %arg11[%c0_7, %c0_8] : memref<128x128xf32, #tpu.memory_space<vmem>>, vector<128x128xf32>
    %cst_9 = arith.constant dense<0.000000e+00> : vector<128x128xf32>
    %16 = tpu.matmul %14, %9, %cst_9 {dimension_numbers = #tpu.dot_dimension_numbers<[0], [0], [1], [1], [0, 1, 1, 1], [], []>} : vector<16x128xf32>, vector<16x128xf32>, vector<128x128xf32> -> vector<128x128xf32>
    %17 = arith.addf %15, %16 : vector<128x128xf32>
    %c0_10 = arith.constant 0 : index
    %c0_11 = arith.constant 0 : index
    %18 = vector.load %arg11[%c0_10, %c0_11] : memref<128x128xf32, #tpu.memory_space<vmem>>, vector<128x128xf32>
    tpu.vector_store %arg11[%c0_10, %c0_11], %17 {strides = array<i32>} : memref<128x128xf32, #tpu.memory_space<vmem>>, vector<128x128xf32>,
    %c0_i32_12 = arith.constant 0 : i32
    %19 = arith.cmpi eq, %arg1, %c0_i32_12 : i32
    %20 = arith.extui %19 : i1 to i32
    %c0_i32_13 = arith.constant 0 : i32
    %21 = arith.cmpi ne, %20, %c0_i32_13 : i32
    scf.if %21 {
      %c0_14 = arith.constant 0 : index
      %c0_15 = arith.constant 0 : index
      %22 = vector.load %arg11[%c0_14, %c0_15] : memref<128x128xf32, #tpu.memory_space<vmem>>, vector<128x128xf32>
      %23 = vector.extract_strided_slice %22 {offsets = [0, 8], sizes = [128, 1], strides = [1, 1]} : vector<128x128xf32> to vector<128x1xf32>
      %24 = vector.shape_cast %23 : vector<128x1xf32> to vector<1x128x1xf32>
      %cst_16 = arith.constant dense<0.000000e+00> : vector<1xf32>
      %25 = vector.multi_reduction <add>, %24, %cst_16 [1, 2] : vector<1x128x1xf32> to vector<1xf32>
      %26 = vector.shape_cast %25 : vector<1xf32> to vector<1x1x1xf32>
      %27 = vector.extract %26[0, 0, 0] : f32 from vector<1x1x1xf32>
      %cst_17 = arith.constant 1.000000e+00 : f32
      %28 = arith.divf %cst_17, %27 : f32
      %29 = vector.broadcast %1 : vector<128x1xi32> to vector<128x128xi32>
      %30 = vector.broadcast %0 : vector<1x128xi32> to vector<128x128xi32>
      %31 = arith.cmpi eq, %29, %30 : vector<128x128xi32>
      %c8_i32 = arith.constant 8 : i32
      %32 = vector.broadcast %c8_i32 : i32 to vector<128x1xi32>
      %33 = arith.cmpi slt, %1, %32 : vector<128x1xi32>
      %34 = vector.broadcast %33 : vector<128x1xi1> to vector<128x128xi1>
      %35 = arith.andi %31, %34 : vector<128x128xi1>
      %36 = arith.extui %35 : vector<128x128xi1> to vector<128x128xi32>
      %37 = arith.sitofp %36 : vector<128x128xi32> to vector<128x128xf32>
      %c8_i32_18 = arith.constant 8 : i32
      %38 = vector.broadcast %c8_i32_18 : i32 to vector<1x128xi32>
      %39 = arith.cmpi slt, %0, %38 : vector<1x128xi32>
      %40 = arith.extui %39 : vector<1x128xi1> to vector<1x128xi32>
      %41 = arith.sitofp %40 : vector<1x128xi32> to vector<1x128xf32>
      %42 = vector.broadcast %41 : vector<1x128xf32> to vector<128x128xf32>
      %43 = arith.mulf %22, %42 : vector<128x128xf32>
      %44 = arith.mulf %43, %37 : vector<128x128xf32>
      %45 = vector.shape_cast %44 : vector<128x128xf32> to vector<1x128x128xf32>
      %cst_19 = arith.constant dense<0.000000e+00> : vector<1xf32>
      %46 = vector.multi_reduction <add>, %45, %cst_19 [1, 2] : vector<1x128x128xf32> to vector<1xf32>
      %47 = vector.shape_cast %46 : vector<1xf32> to vector<1x1x1xf32>
      %48 = vector.extract %47[0, 0, 0] : f32 from vector<1x1x1xf32>
      %49 = arith.mulf %23, %23 : vector<128x1xf32>
      %50 = vector.shape_cast %49 : vector<128x1xf32> to vector<1x128x1xf32>
      %cst_20 = arith.constant dense<0.000000e+00> : vector<1xf32>
      %51 = vector.multi_reduction <add>, %50, %cst_20 [1, 2] : vector<1x128x1xf32> to vector<1xf32>
      %52 = vector.shape_cast %51 : vector<1xf32> to vector<1x1x1xf32>
      %53 = vector.extract %52[0, 0, 0] : f32 from vector<1x1x1xf32>
      %54 = arith.mulf %53, %28 : f32
      %55 = arith.subf %48, %54 : f32
      %cst_21 = arith.constant 0.000000e+00 : f32
      %56 = arith.subf %cst_21, %55 : f32
      %57 = arith.mulf %56, %28 : f32
      %cst_22 = arith.constant 1.000000e+00 : f32
      %58 = vector.broadcast %cst_22 : f32 to vector<128x128xf32>
      %59 = arith.subf %58, %37 : vector<128x128xf32>
      %60 = arith.mulf %43, %59 : vector<128x128xf32>
      %cst_23 = arith.constant dense<0.000000e+00> : vector<128xf32>
      %61 = vector.multi_reduction <add>, %60, %cst_23 [1] : vector<128x128xf32> to vector<128xf32>
      %62 = vector.shape_cast %61 : vector<128xf32> to vector<128x1xf32>
      %63 = math.sqrt %62 : vector<128x1xf32>
      %cst_24 = arith.constant 1.000000e-15 : f32
      %64 = vector.broadcast %cst_24 : f32 to vector<128x1xf32>
      %65 = arith.addf %63, %64 : vector<128x1xf32>
      %66 = tpu.reciprocal %65 : vector<128x1xf32> -> vector<128x1xf32>
      %67 = vector.broadcast %66 : vector<128x1xf32> to vector<128x128xf32>
      %68 = arith.mulf %60, %67 : vector<128x128xf32>
      %69 = tpu.transpose %66, [1, 0] : vector<128x1xf32> -> vector<1x128xf32>
      %70 = vector.broadcast %69 : vector<1x128xf32> to vector<128x128xf32>
      %71 = arith.mulf %68, %70 : vector<128x128xf32>
      %c0_25 = arith.constant 0 : index
      %c0_26 = arith.constant 0 : index
      %c0_27 = arith.constant 0 : index
      %72 = vector.load %arg8[%c0_25, %c0_26, %c0_27] : memref<1x128x128xf32, #tpu.memory_space<vmem>>, vector<1x128x128xf32>
      %73 = vector.shape_cast %72 : vector<1x128x128xf32> to vector<128x128xf32>
      %74 = vector.shape_cast %71 : vector<128x128xf32> to vector<1x128x128xf32>
      tpu.vector_store %arg8[%c0_25, %c0_26, %c0_27], %74 {strides = array<i32>} : memref<1x128x128xf32, #tpu.memory_space<vmem>>, vector<1x128x128xf32>,
      %c0_28 = arith.constant 0 : index
      %c0_29 = arith.constant 0 : index
      %c0_30 = arith.constant 0 : index
      %75 = vector.load %arg9[%c0_28, %c0_29, %c0_30] : memref<1x1x128xf32, #tpu.memory_space<vmem>>, vector<1x1x128xf32>
      %76 = vector.shape_cast %75 : vector<1x1x128xf32> to vector<1x128xf32>
      %c0_i32_31 = arith.constant 0 : i32
      %77 = vector.broadcast %c0_i32_31 : i32 to vector<1x128xi32>
      %78 = arith.cmpi eq, %0, %77 : vector<1x128xi32>
      %cst_32 = arith.constant 0.000000e+00 : f32
      %79 = vector.broadcast %57 : f32 to vector<1x128xf32>
      %80 = vector.broadcast %cst_32 : f32 to vector<1x128xf32>
      %81 = arith.select %78, %79, %80 : vector<1x128xi1>, vector<1x128xf32>
      %82 = arith.addf %76, %81 : vector<1x128xf32>
      %c0_33 = arith.constant 0 : index
      %c0_34 = arith.constant 0 : index
      %c0_35 = arith.constant 0 : index
      %83 = vector.load %arg9[%c0_33, %c0_34, %c0_35] : memref<1x1x128xf32, #tpu.memory_space<vmem>>, vector<1x1x128xf32>
      %84 = vector.shape_cast %83 : vector<1x1x128xf32> to vector<1x128xf32>
      %85 = vector.shape_cast %82 : vector<1x128xf32> to vector<1x1x128xf32>
      tpu.vector_store %arg9[%c0_33, %c0_34, %c0_35], %85 {strides = array<i32>} : memref<1x1x128xf32, #tpu.memory_space<vmem>>, vector<1x1x128xf32>,
    } else {
    }
    return
  }
  func.func @transform_0(%arg0: i32, %arg1: i32) -> (i32, i32, i32) {
    %c0_i32 = arith.constant 0 : i32
    %c0_i32_0 = arith.constant 0 : i32
    %c0_i32_1 = arith.constant 0 : i32
    return %arg0, %c0_i32, %c0_i32_0 : i32, i32, i32
  }
  func.func @transform_1(%arg0: i32, %arg1: i32) -> (i32, i32, i32) {
    %c0_i32 = arith.constant 0 : i32
    %c0_i32_0 = arith.constant 0 : i32
    return %arg0, %arg1, %c0_i32 : i32, i32, i32
  }
  func.func @transform_2(%arg0: i32, %arg1: i32) -> (i32, i32) {
    %c0_i32 = arith.constant 0 : i32
    %c0_i32_0 = arith.constant 0 : i32
    %c0_i32_1 = arith.constant 0 : i32
    return %c0_i32, %c0_i32_0 : i32, i32
  }
  func.func @transform_3(%arg0: i32, %arg1: i32) -> (i32, i32) {
    %c0_i32 = arith.constant 0 : i32
    %c0_i32_0 = arith.constant 0 : i32
    %c0_i32_1 = arith.constant 0 : i32
    return %c0_i32, %c0_i32_0 : i32, i32
  }
  func.func @transform_4(%arg0: i32, %arg1: i32) -> (i32, i32, i32) {
    %c0_i32 = arith.constant 0 : i32
    %c0_i32_0 = arith.constant 0 : i32
    %c0_i32_1 = arith.constant 0 : i32
    return %arg0, %c0_i32, %c0_i32_0 : i32, i32, i32
  }
  func.func @transform_5(%arg0: i32, %arg1: i32) -> (i32, i32, i32) {
    %c0_i32 = arith.constant 0 : i32
    %c0_i32_0 = arith.constant 0 : i32
    %c0_i32_1 = arith.constant 0 : i32
    return %arg0, %c0_i32, %c0_i32_0 : i32, i32, i32
  }
  func.func @transform_6(%arg0: i32, %arg1: i32) -> (i32, i32, i32) {
    %c0_i32 = arith.constant 0 : i32
    %c0_i32_0 = arith.constant 0 : i32
    %c0_i32_1 = arith.constant 0 : i32
    return %arg0, %c0_i32, %c0_i32_0 : i32, i32, i32
  }
  func.func @transform_7(%arg0: i32, %arg1: i32) -> (i32, i32, i32) {
    %c0_i32 = arith.constant 0 : i32
    %c0_i32_0 = arith.constant 0 : i32
    %c0_i32_1 = arith.constant 0 : i32
    return %arg0, %c0_i32, %c0_i32_0 : i32, i32, i32
  }
}

</mosaic_0001>

<llo_original>
// kernel: tpu_custom_call.1
$region0: #{tpu_custom_call.1}
  #allocation0 [shape = 'u32[]', space=smem, size = 0x4, offset = 0x4, fixed_abs, tag = 'smem constant byte address 0x4 - core index']
  #allocation1 [shape = 'u32[144,128]{1,0:T(1,128)}', space=vmem, size = 0x12000, scoped, tag = 'internal scratch']
  #allocation2 [shape = 'bf16[16,128]{1,0:T(8,128)(2,1)}', space=vmem, size = 0x1000, scoped, tag = 'scratch operand']
  #allocation3 [shape = 'f32[128,128]{1,0:T(8,128)}', space=vmem, size = 0x10000, scoped, tag = 'scratch operand']
  %s0 = inlined_call_operand.hbm [shape: f32[2,16,33], index: 0, kind: input, shape index: {}]
  %s1 = inlined_call_operand.hbm [shape: f32[2,16,16], index: 1, kind: input, shape index: {}]
  %s2 = inlined_call_operand.hbm [shape: f32[33,128], index: 2, kind: input, shape index: {}]
  %s3 = inlined_call_operand.vmem [shape: f32[1,128], index: 3, kind: input, shape index: {}]
  %s4 = inlined_call_operand.hbm [shape: f32[2,16,128], index: 4, kind: output, shape index: {0}]
  %s5 = inlined_call_operand.vmem [shape: f32[2,128,33], index: 5, kind: output, shape index: {1}]
  %s6 = inlined_call_operand.hbm [shape: f32[2,128,128], index: 6, kind: output, shape index: {2}]
  %s7 = inlined_call_operand.hbm [shape: f32[2,1,128], index: 7, kind: output, shape index: {3}]
  %8 = xla_tuple %s4, %s5, %s6, %s7
  %s9 = sld [smem:[#allocation0]]
  $region93: #{tpu_custom_call.1} parent=0
    _
  %s11 = ssub.s32 1, %s9
  %s12 = scalar_select 0, %s11, %s9
  $region1: #{tpu_custom_call.1} parent=0
    #allocation4 [shape = 'u8[16384]{0}', space=vmem, size = 0x4000, scoped, tag = 'input window, operand 0']
    #allocation5 [shape = 's32[2]{0}', space=sflag, size = 0x8, scoped, tag = 'scoped memory for tpu_custom_call.1']
    #allocation6 [shape = 's32[2]{0}', space=sflag, size = 0x8, scoped, tag = 'scoped memory for tpu_custom_call.1']
    #allocation7 [shape = 'u8[16384]{0}', space=vmem, size = 0x4000, scoped, tag = 'input window, operand 1']
    #allocation8 [shape = 's32[2]{0}', space=sflag, size = 0x8, scoped, tag = 'scoped memory for tpu_custom_call.1']
    #allocation9 [shape = 'u8[20480]{0}', space=vmem, size = 0x5000, scoped, tag = 'input window, operand 2, single buffered']
    #allocation10 [shape = 'u8[16384]{0}', space=vmem, size = 0x4000, scoped, tag = 'output window, operand 0']
    #allocation11 [shape = 'u8[131072]{0}', space=vmem, size = 0x20000, scoped, tag = 'output window, operand 2']
    #allocation12 [shape = 's32[2]{0}', space=sflag, size = 0x8, scoped, tag = 'scoped memory for tpu_custom_call.1']
    #allocation13 [shape = 'u8[1024]{0}', space=vmem, size = 0x400, scoped, tag = 'output window, operand 3']
    %13 = vsyncpa [#allocation5], 0
    %s14 = scalar_lea.sflag [#allocation5], 1
    %15 = vsyncpa %s14, 0
    %16 = vsyncpa [#allocation8], 0
    %s17 = scalar_lea.sflag [#allocation8], 1
    %18 = vsyncpa %s17, 0
    %19 = vsyncpa [#allocation6], 0
    %s20 = scalar_lea.sflag [#allocation6], 1
    %21 = vsyncpa %s20, 0
    %22 = vsyncpa [#allocation12], 0
    %s23 = scalar_lea.sflag [#allocation12], 1
    %24 = vsyncpa %s23, 0
    loop: start=0, step=1, limit=4
    $region2: #{tpu_custom_call.1} parent=1 // loop_pre_header
      _
    $region3: #{tpu_custom_call.1} parent=1 // loop_header
      %s26 = sphi 0, %s30
      %p27 = scmp.ge.s32.totalorder %s26, 4
      %s33 = sphi 0, %s45
      %s34 = sphi 0, %s41
      %s35 = sphi 0, %s33
      %s36 = sphi 0, %s34
      %s37 = sphi 0, %s35
      %s38 = sphi 0, %s36
      %s48 = sphi 0, %s50
      %s51 = sphi 0, %s48
      %s52 = sphi 0, %s51
      %s68 = sphi 0, %s52
      %s76 = sphi 0, %s78
      %s79 = sphi 0, %s76
      %s80 = sphi 0, %s79
      %s96 = sphi 0, %s80
      %s100 = sphi 0, %s100
      %s102 = sphi 0, %s100
      %s103 = sphi 0, %s102
      %s117 = sphi 0, %s103
      %s121 = sphi 0, %s121
      %s123 = sphi 0, %s121
      %s124 = sphi 0, %s123
      %s138 = sphi 0, %s124
      %s144 = sphi 0, %s146
      %s147 = sphi 0, %s144
      %s148 = sphi 0, %s147
      %s164 = sphi 0, %s148
      %s170 = sphi 0, %s172
      %s173 = sphi 0, %s170
      %s174 = sphi 0, %s173
      %s190 = sphi 0, %s174
      %s196 = sphi 0, %s198
      %s199 = sphi 0, %s196
      %s200 = sphi 0, %s199
      %s216 = sphi 0, %s200
      %s222 = sphi 0, %s224
      %s225 = sphi 0, %s222
      %s226 = sphi 0, %s225
      %s242 = sphi 0, %s226
    $region4: #{tpu_custom_call.1} parent=1 // loop_header_branch
      %29 = sbr.rel (%p27) target = $region8
    $region5: #{tpu_custom_call.1} parent=1 // loop_body
      %s31 = ssub.s32 %s26, 1
      %s32 = ssub.s32 %s26, 2
      %s39 = sadd.s32 1, %s34
      %p40 = scmp.ge.s32.totalorder %s39, 1
      %s41 = scalar_select %p40, 0, %s39
      %s42 = sadd.s32 1, %s33
      %s43 = scalar_select %p40, %s42, %s33
      %p44 = scmp.ge.s32.totalorder %s43, 2
      %s45 = scalar_select %p44, 0, %s43
      %s46 = ssub.s32 %s33, %s45
      %p47 = scmp.eq.s32.totalorder %s46, 0
      %s49 = sadd.s32 %s48, 1
      %s50 = scalar_select %p47, %s48, %s49
      %p53 = pneg %p47
      %p54 = scmp.eq.s32.totalorder %s26, 1
      %p55 = por %p53, %p54
      %p56 = scmp.ne.s32.totalorder %s48, %s51
      %p57 = scmp.eq.s32.totalorder %s26, 0
      %p58 = por %p56, %p57
      %p59 = scmp.ne.s32.totalorder %s48, %s51
      %p60 = scmp.eq.s32.totalorder %s31, 1
      %p61 = por %p59, %p60
      %p62 = scmp.ne.s32.totalorder %s51, %s52
      %p63 = scmp.eq.s32.totalorder %s31, 0
      %p64 = por %p62, %p63
      %p65 = scmp.ne.s32.totalorder %s51, %s52
      %p66 = scmp.eq.s32.totalorder %s32, 1
      %p67 = por %p65, %p66
      %p69 = scmp.ne.s32.totalorder %s52, %s68
      %p70 = scmp.eq.s32.totalorder %s32, 0
      %p71 = por %p69, %p70
      %s72 = ssub.s32 %s33, %s45
      %s73 = ssub.s32 %s34, %s41
      %s74 = sor.u32 %s72, %s73
      %p75 = scmp.eq.s32.totalorder %s74, 0
      %s77 = sadd.s32 %s76, 1
      %s78 = scalar_select %p75, %s76, %s77
      %p81 = pneg %p75
      %p82 = scmp.eq.s32.totalorder %s26, 1
      %p83 = por %p81, %p82
      %p84 = scmp.ne.s32.totalorder %s76, %s79
      %p85 = scmp.eq.s32.totalorder %s26, 0
      %p86 = por %p84, %p85
      %p87 = scmp.ne.s32.totalorder %s76, %s79
      %p88 = scmp.eq.s32.totalorder %s31, 1
      %p89 = por %p87, %p88
      %p90 = scmp.ne.s32.totalorder %s79, %s80
      %p91 = scmp.eq.s32.totalorder %s31, 0
      %p92 = por %p90, %p91
      %p93 = scmp.ne.s32.totalorder %s79, %s80
      %p94 = scmp.eq.s32.totalorder %s32, 1
      %p95 = por %p93, %p94
      %p97 = scmp.ne.s32.totalorder %s80, %s96
      %p98 = scmp.eq.s32.totalorder %s32, 0
      %p99 = por %p97, %p98
      %s101 = sadd.s32 %s100, 1
      %p104 = scmp.eq.s32.totalorder %s26, 1
      %p105 = scmp.ne.s32.totalorder %s100, %s102
      %p106 = scmp.eq.s32.totalorder %s26, 0
      %p107 = por %p105, %p106
      %p108 = scmp.ne.s32.totalorder %s100, %s102
      %p109 = scmp.eq.s32.totalorder %s31, 1
      %p110 = por %p108, %p109
      %p111 = scmp.ne.s32.totalorder %s102, %s103
      %p112 = scmp.eq.s32.totalorder %s31, 0
      %p113 = por %p111, %p112
      %p114 = scmp.ne.s32.totalorder %s102, %s103
      %p115 = scmp.eq.s32.totalorder %s32, 1
      %p116 = por %p114, %p115
      %p118 = scmp.ne.s32.totalorder %s103, %s117
      %p119 = scmp.eq.s32.totalorder %s32, 0
      %p120 = por %p118, %p119
      %s122 = sadd.s32 %s121, 1
      %p125 = scmp.eq.s32.totalorder %s26, 1
      %p126 = scmp.ne.s32.totalorder %s121, %s123
      %p127 = scmp.eq.s32.totalorder %s26, 0
      %p128 = por %p126, %p127
      %p129 = scmp.ne.s32.totalorder %s121, %s123
      %p130 = scmp.eq.s32.totalorder %s31, 1
      %p131 = por %p129, %p130
      %p132 = scmp.ne.s32.totalorder %s123, %s124
      %p133 = scmp.eq.s32.totalorder %s31, 0
      %p134 = por %p132, %p133
      %p135 = scmp.ne.s32.totalorder %s123, %s124
      %p136 = scmp.eq.s32.totalorder %s32, 1
      %p137 = por %p135, %p136
      %p139 = scmp.ne.s32.totalorder %s124, %s138
      %p140 = scmp.eq.s32.totalorder %s32, 0
      %p141 = por %p139, %p140
      %s142 = ssub.s32 %s33, %s45
      %p143 = scmp.eq.s32.totalorder %s142, 0
      %s145 = sadd.s32 %s144, 1
      %s146 = scalar_select %p143, %s144, %s145
      %p149 = pneg %p143
      %p150 = scmp.eq.s32.totalorder %s26, 1
      %p151 = por %p149, %p150
      %p152 = scmp.ne.s32.totalorder %s144, %s147
      %p153 = scmp.eq.s32.totalorder %s26, 0
      %p154 = por %p152, %p153
      %p155 = scmp.ne.s32.totalorder %s144, %s147
      %p156 = scmp.eq.s32.totalorder %s31, 1
      %p157 = por %p155, %p156
      %p158 = scmp.ne.s32.totalorder %s147, %s148
      %p159 = scmp.eq.s32.totalorder %s31, 0
      %p160 = por %p158, %p159
      %p161 = scmp.ne.s32.totalorder %s147, %s148
      %p162 = scmp.eq.s32.totalorder %s32, 1
      %p163 = por %p161, %p162
      %p165 = scmp.ne.s32.totalorder %s148, %s164
      %p166 = scmp.eq.s32.totalorder %s32, 0
      %p167 = por %p165, %p166
      %s168 = ssub.s32 %s33, %s45
      %p169 = scmp.eq.s32.totalorder %s168, 0
      %s171 = sadd.s32 %s170, 1
      %s172 = scalar_select %p169, %s170, %s171
      %p175 = pneg %p169
      %p176 = scmp.eq.s32.totalorder %s26, 1
      %p177 = por %p175, %p176
      %p178 = scmp.ne.s32.totalorder %s170, %s173
      %p179 = scmp.eq.s32.totalorder %s26, 0
      %p180 = por %p178, %p179
      %p181 = scmp.ne.s32.totalorder %s170, %s173
      %p182 = scmp.eq.s32.totalorder %s31, 1
      %p183 = por %p181, %p182
      %p184 = scmp.ne.s32.totalorder %s173, %s174
      %p185 = scmp.eq.s32.totalorder %s31, 0
      %p186 = por %p184, %p185
      %p187 = scmp.ne.s32.totalorder %s173, %s174
      %p188 = scmp.eq.s32.totalorder %s32, 1
      %p189 = por %p187, %p188
      %p191 = scmp.ne.s32.totalorder %s174, %s190
      %p192 = scmp.eq.s32.totalorder %s32, 0
      %p193 = por %p191, %p192
      %s194 = ssub.s32 %s33, %s45
      %p195 = scmp.eq.s32.totalorder %s194, 0
      %s197 = sadd.s32 %s196, 1
      %s198 = scalar_select %p195, %s196, %s197
      %p201 = pneg %p195
      %p202 = scmp.eq.s32.totalorder %s26, 1
      %p203 = por %p201, %p202
      %p204 = scmp.ne.s32.totalorder %s196, %s199
      %p205 = scmp.eq.s32.totalorder %s26, 0
      %p206 = por %p204, %p205
      %p207 = scmp.ne.s32.totalorder %s196, %s199
      %p208 = scmp.eq.s32.totalorder %s31, 1
      %p209 = por %p207, %p208
      %p210 = scmp.ne.s32.totalorder %s199, %s200
      %p211 = scmp.eq.s32.totalorder %s31, 0
      %p212 = por %p210, %p211
      %p213 = scmp.ne.s32.totalorder %s199, %s200
      %p214 = scmp.eq.s32.totalorder %s32, 1
      %p215 = por %p213, %p214
      %p217 = scmp.ne.s32.totalorder %s200, %s216
      %p218 = scmp.eq.s32.totalorder %s32, 0
      %p219 = por %p217, %p218
      %s220 = ssub.s32 %s33, %s45
      %p221 = scmp.eq.s32.totalorder %s220, 0
      %s223 = sadd.s32 %s222, 1
      %s224 = scalar_select %p221, %s222, %s223
      %p227 = pneg %p221
      %p228 = scmp.eq.s32.totalorder %s26, 1
      %p229 = por %p227, %p228
      %p230 = scmp.ne.s32.totalorder %s222, %s225
      %p231 = scmp.eq.s32.totalorder %s26, 0
      %p232 = por %p230, %p231
      %p233 = scmp.ne.s32.totalorder %s222, %s225
      %p234 = scmp.eq.s32.totalorder %s31, 1
      %p235 = por %p233, %p234
      %p236 = scmp.ne.s32.totalorder %s225, %s226
      %p237 = scmp.eq.s32.totalorder %s31, 0
      %p238 = por %p236, %p237
      %p239 = scmp.ne.s32.totalorder %s225, %s226
      %p240 = scmp.eq.s32.totalorder %s32, 1
      %p241 = por %p239, %p240
      %p243 = scmp.ne.s32.totalorder %s226, %s242
      %p244 = scmp.eq.s32.totalorder %s32, 0
      %p245 = por %p243, %p244
      %p246 = scmp.le.s32.totalorder 1, %s26
      %p247 = scmp.lt.s32.totalorder %s26, 3
      %p248 = pnand %p246, %p247
      %p249 = pneg %p248
      // Predicated region
      $region9: #{tpu_custom_call.1} parent=5 // pred_check
        _
      $region10: #{tpu_custom_call.1} parent=5 // pred_check_branch
        %251 = sbr.rel (%p248) target = $region12
      $region11: #{tpu_custom_call.1} parent=5 // pred_region
        %s252 = ssub.s32 %s26, 1
        // Predicated region
        $region13: #{tpu_custom_call.1} parent=11 // pred_check
          %p253 = pneg %p113
        $region14: #{tpu_custom_call.1} parent=11 // pred_check_branch
          %255 = sbr.rel (%p253) target = $region16
        $region15: #{tpu_custom_call.1} parent=11 // pred_region
          %s257 = ssub.s32 640, 640
          %258 = vsyncadd [#allocation8], %s257
          %s259 = sshll.u32 [#allocation9], 4
          %s260 = int_to_ptr.vmem [resolvable:$true] %s259
          %265 = dma.hbm_to_vmem [thread:$0]  %s2, 640, %s260, [#allocation8], 128, 128, 8
        $region16: #{tpu_custom_call.1} parent=11 // pred_fallthru
          _
        // Predicated region
        $region17: #{tpu_custom_call.1} parent=11 // pred_check
          %p266 = pneg %p134
        $region18: #{tpu_custom_call.1} parent=11 // pred_check_branch
          %268 = sbr.rel (%p266) target = $region20
        $region19: #{tpu_custom_call.1} parent=11 // pred_region
          _
        $region20: #{tpu_custom_call.1} parent=11 // pred_fallthru
          _
      $region12: #{tpu_custom_call.1} parent=5 // pred_fallthru
        _
      %p269 = scmp.lt.s32.totalorder %s26, 2
      // Predicated region
      $region21: #{tpu_custom_call.1} parent=5 // pred_check
        %p270 = pneg %p269
      $region22: #{tpu_custom_call.1} parent=5 // pred_check_branch
        %272 = sbr.rel (%p270) target = $region24
      $region23: #{tpu_custom_call.1} parent=5 // pred_region
        // Predicated region
        $region25: #{tpu_custom_call.1} parent=23 // pred_check
          %p273 = pneg %p58
        $region26: #{tpu_custom_call.1} parent=23 // pred_check_branch
          %275 = sbr.rel (%p273) target = $region28
        $region27: #{tpu_custom_call.1} parent=23 // pred_region
          %s276 = sand.u32 %s48, 1
          %s277 = scalar_lea.sflag [#allocation5], %s276
          %s278 = sand.u32 %s48, 1
          %s279 = smul.addr %s278, 16
          %s280 = scalar_lea.vmem [#allocation4], %s279
          %s282 = ssub.s32 256, 256
          %283 = vsyncadd %s277, %s282
          %s284 = smul.addr %s33, 2
          %s285 = smul.addr %s284, 128
          %s286 = scalar_lea.hbm %s0, %s285
          %s287 = sshll.u32 %s280, 4
          %s288 = int_to_ptr.vmem [resolvable:$true] %s287
          %293 = dma.hbm_to_vmem [thread:$0]  %s286, 256, %s288, %s277, 128, 128, 8
        $region28: #{tpu_custom_call.1} parent=23 // pred_fallthru
          _
        // Predicated region
        $region29: #{tpu_custom_call.1} parent=23 // pred_check
          %p294 = pneg %p86
        $region30: #{tpu_custom_call.1} parent=23 // pred_check_branch
          %296 = sbr.rel (%p294) target = $region32
        $region31: #{tpu_custom_call.1} parent=23 // pred_region
          %s297 = sand.u32 %s26, 1
          %s298 = scalar_lea.sflag [#allocation8], %s297
          %s299 = sand.u32 %s76, 1
          %s300 = smul.addr %s299, 16
          %s301 = scalar_lea.vmem [#allocation7], %s300
          %s302 = smul.u32 2, %s34
          %s304 = ssub.s32 256, 256
          %305 = vsyncadd %s298, %s304
          %s306 = smul.addr %s33, 2
          %s307 = sadd.s32 %s302, %s306
          %s308 = smul.addr %s307, 128
          %s309 = scalar_lea.hbm %s1, %s308
          %s310 = sshll.u32 %s301, 4
          %s311 = int_to_ptr.vmem [resolvable:$true] %s310
          %316 = dma.hbm_to_vmem [thread:$0]  %s309, 256, %s311, %s298, 128, 128, 8
        $region32: #{tpu_custom_call.1} parent=23 // pred_fallthru
          _
      $region24: #{tpu_custom_call.1} parent=5 // pred_fallthru
        _
      %p317 = scmp.le.s32.totalorder 1, %s26
      %p318 = scmp.lt.s32.totalorder %s26, 3
      %p319 = pnand %p317, %p318
      %p320 = pneg %p319
      // Predicated region
      $region33: #{tpu_custom_call.1} parent=5 // pred_check
        _
      $region34: #{tpu_custom_call.1} parent=5 // pred_check_branch
        %322 = sbr.rel (%p319) target = $region36
      $region35: #{tpu_custom_call.1} parent=5 // pred_region
        %s323 = ssub.s32 %s26, 1
        %s324 = sand.u32 %s51, 1
        %s325 = scalar_lea.sflag [#allocation5], %s324
        %s326 = sand.u32 %s51, 1
        %s327 = smul.addr %s326, 16
        %s328 = scalar_lea.vmem [#allocation4], %s327
        // Predicated region
        $region37: #{tpu_custom_call.1} parent=35 // pred_check
          %p329 = pneg %p64
        $region38: #{tpu_custom_call.1} parent=35 // pred_check_branch
          %331 = sbr.rel (%p329) target = $region40
        $region39: #{tpu_custom_call.1} parent=35 // pred_region
          %332 = dma.done %s325, 256
        $region40: #{tpu_custom_call.1} parent=35 // pred_fallthru
          _
        %s333 = sand.u32 %s31, 1
        %s334 = scalar_lea.sflag [#allocation8], %s333
        %s335 = sand.u32 %s79, 1
        %s336 = smul.addr %s335, 16
        %s337 = scalar_lea.vmem [#allocation7], %s336
        // Predicated region
        $region41: #{tpu_custom_call.1} parent=35 // pred_check
          %p338 = pneg %p92
        $region42: #{tpu_custom_call.1} parent=35 // pred_check_branch
          %340 = sbr.rel (%p338) target = $region44
        $region43: #{tpu_custom_call.1} parent=35 // pred_region
          %341 = dma.done %s334, 256
        $region44: #{tpu_custom_call.1} parent=35 // pred_fallthru
          _
        // Predicated region
        $region45: #{tpu_custom_call.1} parent=35 // pred_check
          %p342 = pneg %p113
        $region46: #{tpu_custom_call.1} parent=35 // pred_check_branch
          %344 = sbr.rel (%p342) target = $region48
        $region47: #{tpu_custom_call.1} parent=35 // pred_region
          %345 = dma.done [#allocation8], 640
        $region48: #{tpu_custom_call.1} parent=35 // pred_fallthru
          _
        %s346 = sand.u32 %s51, 1
        %s347 = scalar_lea.sflag [#allocation5], %s346
        %s348 = sand.u32 %s51, 1
        %s349 = smul.addr %s348, 16
        %s350 = scalar_lea.vmem [#allocation4], %s349
        %p351 = pneg %p64
        %p352 = pneg %p61
        %s353 = sand.u32 %s31, 1
        %s354 = scalar_lea.sflag [#allocation8], %s353
        %s355 = sand.u32 %s79, 1
        %s356 = smul.addr %s355, 16
        %s357 = scalar_lea.vmem [#allocation7], %s356
        %p358 = pneg %p92
        %p359 = pneg %p89
        %p360 = pneg %p113
        %p361 = pneg %p110
        %p362 = pneg %p134
        %p363 = pneg %p131
        %p364 = pneg %p160
        %p365 = pneg %p157
        %s366 = sand.u32 %s147, 1
        %s367 = scalar_lea.sflag [#allocation6], %s366
        %s368 = sand.u32 %s147, 1
        %s369 = smul.addr %s368, 16
        %s370 = scalar_lea.vmem [#allocation10], %s369
        %p371 = pneg %p186
        %p372 = pneg %p183
        %p373 = scmp.lt.s32.totalorder %s35, 1
        %s374 = scalar_select %p373, %s35, 1
        %s375 = smul.addr %s374, 16
        %s376 = smul.addr %s375, 8
        %s377 = scalar_lea.vmem %s5, %s376
        %p378 = pneg %p212
        %p379 = pneg %p209
        %s380 = sand.u32 %s31, 1
        %s381 = scalar_lea.sflag [#allocation12], %s380
        %s382 = sand.u32 %s199, 1
        %s383 = smul.addr %s382, 128
        %s384 = scalar_lea.vmem [#allocation11], %s383
        %p385 = pneg %p238
        %p386 = pneg %p235
        %s387 = sand.u32 %s31, 1
        %s388 = scalar_lea.sflag [#allocation12], %s387
        %s389 = sand.u32 %s225, 1
        %s390 = scalar_lea.vmem [#allocation13], %s389
        %s391 = smul.u32 2, %s36
        %p392 = scmp.lt.s32.totalorder %s35, 1
        %s393 = scalar_select %p392, %s35, 1
        %s394 = smul.addr %s393, 16
        %s395 = smul.addr %s394, 8
        %s396 = scalar_lea.vmem %s5, %s395
        %v398 = vlaneseq
        %v399 = vand.u32 %v398, 127
        %v400 = vlaneseq
        %v401 = vshrl.u32 %v400, 7
        %v402 = vadd.s32 %v401, 8
        %v403 = vadd.s32 %v401, 16
        %v404 = vadd.s32 %v401, 24
        %v405 = vadd.s32 %v401, 32
        %v406 = vadd.s32 %v401, 40
        %v407 = vadd.s32 %v401, 48
        %v408 = vadd.s32 %v401, 56
        %v409 = vadd.s32 %v401, 64
        %v410 = vadd.s32 %v401, 72
        %v411 = vadd.s32 %v401, 80
        %v412 = vadd.s32 %v401, 88
        %v413 = vadd.s32 %v401, 96
        %v414 = vadd.s32 %v401, 104
        %v415 = vadd.s32 %v401, 112
        %v416 = vadd.s32 %v401, 120
        %p417 = scmp.eq.s32.totalorder %s36, 0
        // Predicated region
        $region49: #{tpu_custom_call.1} parent=35 // pred_check
          %p418 = pneg %p417
        $region50: #{tpu_custom_call.1} parent=35 // pred_check_branch
          %420 = sbr.rel (%p418) target = $region52
        $region51: #{tpu_custom_call.1} parent=35 // pred_region
          %v421 = vld [vmem:[%s328] sm:$0xff]
          %v422 = vld [vmem:[%s328 + $0x8] sm:$0xff]
          %v423 = vld [vmem:[#allocation9] sm:$0xff]
          %v424 = vld [vmem:[#allocation9 + $0x8] sm:$0xff]
          %v425 = vld [vmem:[#allocation9 + $0x10] sm:$0xff]
          %v426 = vld [vmem:[#allocation9 + $0x18] sm:$0xff]
          %v427 = vld [vmem:[#allocation9 + $0x20] sm:$0x1]
          %v428 = vld [vmem:[%s3] sm:$0x1]
          %v430 = vlaneseq
          %v431 = vshrl.u32 %v430, 7
          %v432 = vsub.s32 0, %v431
          %v433 = vrot.slane %v428, %v432
          %vm435 = vcmask 269312
          %v437 = vsel %vm435, %v421, 0
          %v440 = vsel %vm435, %v422, 0
          %vm442 = vcmask 1040384
          %v444 = vsel %vm442, %v427, 0
          %446 = vmatprep.subr.mxu0 0.0
          %447 = vmatpush1.msra.mxu0 0.0
          %448 = vmatprep.subr.mxu0 0.0
          %449 = vmatpush1.msra.mxu0 0.0
          %450 = vmatprep.subr.mxu0 0.0
          %451 = vmatpush1.msra.mxu0 0.0
          %452 = vmatprep.subr.mxu0 0.0
          %453 = vmatpush1.msra.mxu0 0.0
          %454 = vmatprep.subr.mxu0 0.0
          %455 = vmatpush1.msra.mxu0 0.0
          %456 = vmatprep.subr.mxu0 0.0
          %457 = vmatpush1.msra.mxu0 0.0
          %458 = vmatprep.subr.mxu0 0.0
          %459 = vmatpush1.msra.mxu0 0.0
          %460 = vmatprep.subr.mxu0 0.0
          %461 = vmatpush1.msra.mxu0 0.0
          %462 = vmatprep.subr.mxu0 0.0
          %463 = vmatpush1.msra.mxu0 0.0
          %464 = vmatprep.subr.mxu0 0.0
          %465 = vmatpush1.msra.mxu0 0.0
          %466 = vmatprep.subr.mxu0 0.0
          %467 = vmatpush1.msra.mxu0 0.0
          %468 = vmatprep.subr.mxu0 0.0
          %469 = vmatpush1.msra.mxu0 %v444
          %470 = vmatprep.subr.mxu0 0.0
          %471 = vmatpush1.msra.mxu0 %v426
          %472 = vmatprep.subr.mxu0 0.0
          %473 = vmatpush1.msra.mxu0 %v425
          %474 = vmatprep.subr.mxu0 0.0
          %475 = vmatpush1.msra.mxu0 %v424
          %476 = vmatprep.subr.mxu0 0.0
          %477 = vmatpush1.msra.mxu0 %v423
          %478 = vmatprep.subr.mxu0 0.0
          %479 = vmatpush2.msra.mxu0 0.0
          %480 = vmatprep.subr.mxu0 0.0
          %481 = vmatpush2.msra.mxu0 0.0
          %482 = vmatprep.subr.mxu0 0.0
          %483 = vmatpush2.msra.mxu0 0.0
          %484 = vmatprep.subr.mxu0 0.0
          %485 = vmatpush2.msra.mxu0 0.0
          %486 = vmatprep.subr.mxu0 0.0
          %487 = vmatpush2.msra.mxu0 0.0
          %488 = vmatprep.subr.mxu0 0.0
          %489 = vmatpush2.msra.mxu0 0.0
          %490 = vmatprep.subr.mxu0 0.0
          %491 = vmatpush2.msra.mxu0 0.0
          %492 = vmatprep.subr.mxu0 0.0
          %493 = vmatpush2.msra.mxu0 0.0
          %494 = vmatprep.subr.mxu0 0.0
          %495 = vmatpush2.msra.mxu0 0.0
          %496 = vmatprep.subr.mxu0 0.0
          %497 = vmatpush2.msra.mxu0 0.0
          %498 = vmatprep.subr.mxu0 0.0
          %499 = vmatpush2.msra.mxu0 0.0
          %500 = vmatprep.subr.mxu0 0.0
          %501 = vmatpush2.msra.mxu0 0.0
          %502 = vmatprep.subr.mxu0 0.0
          %503 = vmatpush2.msra.mxu0 0.0
          %504 = vmatprep.subr.mxu0 0.0
          %505 = vmatpush2.msra.mxu0 0.0
          %506 = vmatprep.subr.mxu0 0.0
          %507 = vmatpush2.msra.mxu0 0.0
          %508 = vmatprep.subr.mxu0 0.0
          %509 = vmatpush2.msra.mxu0 0.0
          %510 = vmatprep.mubr.f32.mxu0 0.0
          %511 = vmatmul.mubr.f32.gmra.mxu0 %v437
          %v512 = vpop.f32.mrf.mxu0
          %v513 = vadd.f32 %v433, %v512
          %v514 = vpop.f32.mrf.mxu0
          %515 = vmatprep.mubr.f32.mxu0 0.0
          %516 = vmatmul.mubr.f32.gmra.mxu0 %v440
          %v517 = vpop.f32.mrf.mxu0
          %v518 = vadd.f32 %v433, %v517
          %v519 = vpop.f32.mrf.mxu0
          %520 = vdwg.mxu0
          %vm521 = vcmp.lt.s32.totalorder %v399, 8
          %v522 = vsel %vm521, 1, 0
          %vm523 = vcmp.eq.s32.totalorder %v522, 1
          %v524 = vsel %vm523, %v513, -1e+30
          %v525 = vsel %vm523, %v518, -1e+30
          %526 = vmax.xlane.f32.xlu0 %v524
          %v527 = vpop.xlane.xlu0 %526
          %528 = vmax.xlane.f32.xlu0 %v525
          %v529 = vpop.xlane.xlu0 %528
          %v530 = vsub.f32 %v524, %v527
          %v531 = vsub.f32 %v525, %v529
          %v532 = vmul.f32 %v530, 1.442695
          %v533 = vpow.pop %v532
          %v534 = vmul.f32 %v531, 1.442695
          %v535 = vpow.pop %v534
          %536 = vadd.xlane.f32.xlu0 %v533
          %v537 = vpop.xlane.xlu0 %536
          %538 = vadd.xlane.f32.xlu0 %v535
          %v539 = vpop.xlane.xlu0 %538
          %v540 = vrcp.pop %v537
          %v541 = vrcp.pop %v539
          %v542 = vmul.f32 %v533, %v540
          %v543 = vmul.f32 %v535, %v541
          %544 = vset.pattern.permute.xlu0 32
          %545 = vperm.xlu0 %544, %v421
          %v546 = vpop.permute.xlu0 %545
          %548 = vset.pattern.permute.xlu0 32
          %549 = vperm.xlu0 %548, %v422
          %v550 = vpop.permute.xlu0 %549
          %v552 = vmul.f32 %v542, %v546
          %v553 = vmul.f32 %v543, %v550
          %554 = vst [vmem:[%s370] sm:$0xff] %v552
          %555 = vst [vmem:[%s370 + $0x8] sm:$0xff] %v553
          %vm556 = vcmp.eq.s32.totalorder %v399, 8
          %v557 = vsel %vm556, 1, 0
          %vm558 = vcmp.eq.s32.totalorder %v557, 1
          %v559 = vsel %vm558, 1.0, %v552
          %v560 = vsel %vm558, 1.0, %v553
          %v561 = vpack.c.bf16 %v560, %v559
          %v563 = vunpack.c.l.b16 %v561
          %v564 = vunpack.c.h.b16 %v561
          %v565 = vpack.c.b16 %v563, %v563
          %v566 = vpack.c.b16 %v564, %v564
          %569 = vst [vmem:[#allocation2] sm:$0xf] %v565
          %570 = vst [vmem:[#allocation2 + $0x4] sm:$0xf] %v566
          %v571 = vmul.f32 %v421, %v546
          %v572 = vmul.f32 %v422, %v550
          %573 = vxpose.xlu0.b32.start [1/16] %v552, 128
          %574 = vxpose.xlu0.b32.cont [2/16] %v553, 128
          %575 = vxpose.xlu0.b32.cont [3/16] 0.0, 128
          %576 = vxpose.xlu0.b32.cont [4/16] 0.0, 128
          %577 = vxpose.xlu0.b32.cont [5/16] 0.0, 128
          %578 = vxpose.xlu0.b32.cont [6/16] 0.0, 128
          %579 = vxpose.xlu0.b32.cont [7/16] 0.0, 128
          %580 = vxpose.xlu0.b32.cont [8/16] 0.0, 128
          %581 = vxpose.xlu0.b32.cont [9/16] 0.0, 128
          %582 = vxpose.xlu0.b32.cont [10/16] 0.0, 128
          %583 = vxpose.xlu0.b32.cont [11/16] 0.0, 128
          %584 = vxpose.xlu0.b32.cont [12/16] 0.0, 128
          %585 = vxpose.xlu0.b32.cont [13/16] 0.0, 128
          %586 = vxpose.xlu0.b32.cont [14/16] 0.0, 128
          %587 = vxpose.xlu0.b32.cont [15/16] 0.0, 128
          %588 = vxpose.xlu0.b32.end [16/16] 0.0, 128
          %v589 = vpop.trf.xlu0
          %v590 = vpop.trf.xlu0
          %v591 = vpop.trf.xlu0
          %v592 = vpop.trf.xlu0
          %v593 = vpop.trf.xlu0
          %v594 = vpop.trf.xlu0
          %v595 = vpop.trf.xlu0
          %v596 = vpop.trf.xlu0
          %v597 = vpop.trf.xlu0
          %v598 = vpop.trf.xlu0
          %v599 = vpop.trf.xlu0
          %v600 = vpop.trf.xlu0
          %v601 = vpop.trf.xlu0
          %v602 = vpop.trf.xlu0
          %v603 = vpop.trf.xlu0
          %v604 = vpop.trf.xlu0
          %vm605 = vcmask 130048
          %v607 = vsel %vm605, %v589, 0
          %v610 = vsel %vm605, %v590, 0
          %v613 = vsel %vm605, %v591, 0
          %v616 = vsel %vm605, %v592, 0
          %v619 = vsel %vm605, %v593, 0
          %v622 = vsel %vm605, %v594, 0
          %v625 = vsel %vm605, %v595, 0
          %v628 = vsel %vm605, %v596, 0
          %v631 = vsel %vm605, %v597, 0
          %v634 = vsel %vm605, %v598, 0
          %v637 = vsel %vm605, %v599, 0
          %v640 = vsel %vm605, %v600, 0
          %v643 = vsel %vm605, %v601, 0
          %v646 = vsel %vm605, %v602, 0
          %v649 = vsel %vm605, %v603, 0
          %v652 = vsel %vm605, %v604, 0
          %654 = vmatprep.subr.mxu0 0.0
          %655 = vmatpush1.msra.mxu0 0.0
          %656 = vmatprep.subr.mxu0 0.0
          %657 = vmatpush1.msra.mxu0 0.0
          %658 = vmatprep.subr.mxu0 0.0
          %659 = vmatpush1.msra.mxu0 0.0
          %660 = vmatprep.subr.mxu0 0.0
          %661 = vmatpush1.msra.mxu0 0.0
          %662 = vmatprep.subr.mxu0 0.0
          %663 = vmatpush1.msra.mxu0 0.0
          %664 = vmatprep.subr.mxu0 0.0
          %665 = vmatpush1.msra.mxu0 0.0
          %666 = vmatprep.subr.mxu0 0.0
          %667 = vmatpush1.msra.mxu0 0.0
          %668 = vmatprep.subr.mxu0 0.0
          %669 = vmatpush1.msra.mxu0 0.0
          %670 = vmatprep.subr.mxu0 0.0
          %671 = vmatpush1.msra.mxu0 0.0
          %672 = vmatprep.subr.mxu0 0.0
          %673 = vmatpush1.msra.mxu0 0.0
          %674 = vmatprep.subr.mxu0 0.0
          %675 = vmatpush1.msra.mxu0 0.0
          %676 = vmatprep.subr.mxu0 0.0
          %677 = vmatpush1.msra.mxu0 0.0
          %678 = vmatprep.subr.mxu0 0.0
          %679 = vmatpush1.msra.mxu0 0.0
          %680 = vmatprep.subr.mxu0 0.0
          %681 = vmatpush1.msra.mxu0 0.0
          %682 = vmatprep.subr.mxu0 0.0
          %683 = vmatpush1.msra.mxu0 %v572
          %684 = vmatprep.subr.mxu0 0.0
          %685 = vmatpush1.msra.mxu0 %v571
          %686 = vmatprep.subr.mxu0 0.0
          %687 = vmatpush2.msra.mxu0 0.0
          %688 = vmatprep.subr.mxu0 0.0
          %689 = vmatpush2.msra.mxu0 0.0
          %690 = vmatprep.subr.mxu0 0.0
          %691 = vmatpush2.msra.mxu0 0.0
          %692 = vmatprep.subr.mxu0 0.0
          %693 = vmatpush2.msra.mxu0 0.0
          %694 = vmatprep.subr.mxu0 0.0
          %695 = vmatpush2.msra.mxu0 0.0
          %696 = vmatprep.subr.mxu0 0.0
          %697 = vmatpush2.msra.mxu0 0.0
          %698 = vmatprep.subr.mxu0 0.0
          %699 = vmatpush2.msra.mxu0 0.0
          %700 = vmatprep.subr.mxu0 0.0
          %701 = vmatpush2.msra.mxu0 0.0
          %702 = vmatprep.subr.mxu0 0.0
          %703 = vmatpush2.msra.mxu0 0.0
          %704 = vmatprep.subr.mxu0 0.0
          %705 = vmatpush2.msra.mxu0 0.0
          %706 = vmatprep.subr.mxu0 0.0
          %707 = vmatpush2.msra.mxu0 0.0
          %708 = vmatprep.subr.mxu0 0.0
          %709 = vmatpush2.msra.mxu0 0.0
          %710 = vmatprep.subr.mxu0 0.0
          %711 = vmatpush2.msra.mxu0 0.0
          %712 = vmatprep.subr.mxu0 0.0
          %713 = vmatpush2.msra.mxu0 0.0
          %714 = vmatprep.subr.mxu0 0.0
          %715 = vmatpush2.msra.mxu0 0.0
          %716 = vmatprep.subr.mxu0 0.0
          %717 = vmatpush2.msra.mxu0 0.0
          %718 = vmatprep.mubr.f32.mxu0 0.0
          %719 = vmatmul.mubr.f32.gmra.mxu0 %v607
          %v720 = vpop.f32.mrf.mxu0
          %v721 = vadd.f32 0.0, %v720
          %v722 = vpop.f32.mrf.mxu0
          %723 = vmatprep.mubr.f32.mxu0 0.0
          %724 = vmatmul.mubr.f32.gmra.mxu0 %v610
          %v725 = vpop.f32.mrf.mxu0
          %v726 = vadd.f32 0.0, %v725
          %v727 = vpop.f32.mrf.mxu0
          %728 = vmatprep.mubr.f32.mxu0 0.0
          %729 = vmatmul.mubr.f32.gmra.mxu0 %v613
          %v730 = vpop.f32.mrf.mxu0
          %v731 = vadd.f32 0.0, %v730
          %v732 = vpop.f32.mrf.mxu0
          %733 = vmatprep.mubr.f32.mxu0 0.0
          %734 = vmatmul.mubr.f32.gmra.mxu0 %v616
          %v735 = vpop.f32.mrf.mxu0
          %v736 = vadd.f32 0.0, %v735
          %v737 = vpop.f32.mrf.mxu0
          %738 = vmatprep.mubr.f32.mxu0 0.0
          %739 = vmatmul.mubr.f32.gmra.mxu0 %v619
          %v740 = vpop.f32.mrf.mxu0
          %v741 = vadd.f32 0.0, %v740
          %v742 = vpop.f32.mrf.mxu0
          %743 = vmatprep.mubr.f32.mxu0 0.0
          %744 = vmatmul.mubr.f32.gmra.mxu0 %v622
          %v745 = vpop.f32.mrf.mxu0
          %v746 = vadd.f32 0.0, %v745
          %v747 = vpop.f32.mrf.mxu0
          %748 = vmatprep.mubr.f32.mxu0 0.0
          %749 = vmatmul.mubr.f32.gmra.mxu0 %v625
          %v750 = vpop.f32.mrf.mxu0
          %v751 = vadd.f32 0.0, %v750
          %v752 = vpop.f32.mrf.mxu0
          %753 = vmatprep.mubr.f32.mxu0 0.0
          %754 = vmatmul.mubr.f32.gmra.mxu0 %v628
          %v755 = vpop.f32.mrf.mxu0
          %v756 = vadd.f32 0.0, %v755
          %v757 = vpop.f32.mrf.mxu0
          %758 = vmatprep.mubr.f32.mxu0 0.0
          %759 = vmatmul.mubr.f32.gmra.mxu0 %v631
          %v760 = vpop.f32.mrf.mxu0
          %v761 = vadd.f32 0.0, %v760
          %v762 = vpop.f32.mrf.mxu0
          %763 = vmatprep.mubr.f32.mxu0 0.0
          %764 = vmatmul.mubr.f32.gmra.mxu0 %v634
          %v765 = vpop.f32.mrf.mxu0
          %v766 = vadd.f32 0.0, %v765
          %v767 = vpop.f32.mrf.mxu0
          %768 = vmatprep.mubr.f32.mxu0 0.0
          %769 = vmatmul.mubr.f32.gmra.mxu0 %v637
          %v770 = vpop.f32.mrf.mxu0
          %v771 = vadd.f32 0.0, %v770
          %v772 = vpop.f32.mrf.mxu0
          %773 = vmatprep.mubr.f32.mxu0 0.0
          %774 = vmatmul.mubr.f32.gmra.mxu0 %v640
          %v775 = vpop.f32.mrf.mxu0
          %v776 = vadd.f32 0.0, %v775
          %v777 = vpop.f32.mrf.mxu0
          %778 = vmatprep.mubr.f32.mxu0 0.0
          %779 = vmatmul.mubr.f32.gmra.mxu0 %v643
          %v780 = vpop.f32.mrf.mxu0
          %v781 = vadd.f32 0.0, %v780
          %v782 = vpop.f32.mrf.mxu0
          %783 = vmatprep.mubr.f32.mxu0 0.0
          %784 = vmatmul.mubr.f32.gmra.mxu0 %v646
          %v785 = vpop.f32.mrf.mxu0
          %v786 = vadd.f32 0.0, %v785
          %v787 = vpop.f32.mrf.mxu0
          %788 = vmatprep.mubr.f32.mxu0 0.0
          %789 = vmatmul.mubr.f32.gmra.mxu0 %v649
          %v790 = vpop.f32.mrf.mxu0
          %v791 = vadd.f32 0.0, %v790
          %v792 = vpop.f32.mrf.mxu0
          %793 = vmatprep.mubr.f32.mxu0 0.0
          %794 = vmatmul.mubr.f32.gmra.mxu0 %v652
          %v795 = vpop.f32.mrf.mxu0
          %v796 = vadd.f32 0.0, %v795
          %v797 = vpop.f32.mrf.mxu0
          %798 = vdwg.mxu0
          %vm799 = vcmp.gt.f32.partialorder %v721, 0.0
          %vm800 = vcmp.gt.f32.partialorder %v726, 0.0
          %vm801 = vcmp.gt.f32.partialorder %v731, 0.0
          %vm802 = vcmp.gt.f32.partialorder %v736, 0.0
          %vm803 = vcmp.gt.f32.partialorder %v741, 0.0
          %vm804 = vcmp.gt.f32.partialorder %v746, 0.0
          %vm805 = vcmp.gt.f32.partialorder %v751, 0.0
          %vm806 = vcmp.gt.f32.partialorder %v756, 0.0
          %vm807 = vcmp.gt.f32.partialorder %v761, 0.0
          %vm808 = vcmp.gt.f32.partialorder %v766, 0.0
          %vm809 = vcmp.gt.f32.partialorder %v771, 0.0
          %vm810 = vcmp.gt.f32.partialorder %v776, 0.0
          %vm811 = vcmp.gt.f32.partialorder %v781, 0.0
          %vm812 = vcmp.gt.f32.partialorder %v786, 0.0
          %vm813 = vcmp.gt.f32.partialorder %v791, 0.0
          %vm814 = vcmp.gt.f32.partialorder %v796, 0.0
          %v815 = vmul.f32 %v721, 1.442695
          %v816 = vpow.pop %v815
          %v817 = vmul.f32 %v726, 1.442695
          %v818 = vpow.pop %v817
          %v819 = vmul.f32 %v731, 1.442695
          %v820 = vpow.pop %v819
          %v821 = vmul.f32 %v736, 1.442695
          %v822 = vpow.pop %v821
          %v823 = vmul.f32 %v741, 1.442695
          %v824 = vpow.pop %v823
          %v825 = vmul.f32 %v746, 1.442695
          %v826 = vpow.pop %v825
          %v827 = vmul.f32 %v751, 1.442695
          %v828 = vpow.pop %v827
          %v829 = vmul.f32 %v756, 1.442695
          %v830 = vpow.pop %v829
          %v831 = vmul.f32 %v761, 1.442695
          %v832 = vpow.pop %v831
          %v833 = vmul.f32 %v766, 1.442695
          %v834 = vpow.pop %v833
          %v835 = vmul.f32 %v771, 1.442695
          %v836 = vpow.pop %v835
          %v837 = vmul.f32 %v776, 1.442695
          %v838 = vpow.pop %v837
          %v839 = vmul.f32 %v781, 1.442695
          %v840 = vpow.pop %v839
          %v841 = vmul.f32 %v786, 1.442695
          %v842 = vpow.pop %v841
          %v843 = vmul.f32 %v791, 1.442695
          %v844 = vpow.pop %v843
          %v845 = vmul.f32 %v796, 1.442695
          %v846 = vpow.pop %v845
          %v847 = vsub.f32 %v816, 1.0
          %v848 = vsub.f32 %v818, 1.0
          %v849 = vsub.f32 %v820, 1.0
          %v850 = vsub.f32 %v822, 1.0
          %v851 = vsub.f32 %v824, 1.0
          %v852 = vsub.f32 %v826, 1.0
          %v853 = vsub.f32 %v828, 1.0
          %v854 = vsub.f32 %v830, 1.0
          %v855 = vsub.f32 %v832, 1.0
          %v856 = vsub.f32 %v834, 1.0
          %v857 = vsub.f32 %v836, 1.0
          %v858 = vsub.f32 %v838, 1.0
          %v859 = vsub.f32 %v840, 1.0
          %v860 = vsub.f32 %v842, 1.0
          %v861 = vsub.f32 %v844, 1.0
          %v862 = vsub.f32 %v846, 1.0
          %v863 = vmul.f32 %v847, 1.6732632
          %v864 = vmul.f32 %v848, 1.6732632
          %v865 = vmul.f32 %v849, 1.6732632
          %v866 = vmul.f32 %v850, 1.6732632
          %v867 = vmul.f32 %v851, 1.6732632
          %v868 = vmul.f32 %v852, 1.6732632
          %v869 = vmul.f32 %v853, 1.6732632
          %v870 = vmul.f32 %v854, 1.6732632
          %v871 = vmul.f32 %v855, 1.6732632
          %v872 = vmul.f32 %v856, 1.6732632
          %v873 = vmul.f32 %v857, 1.6732632
          %v874 = vmul.f32 %v858, 1.6732632
          %v875 = vmul.f32 %v859, 1.6732632
          %v876 = vmul.f32 %v860, 1.6732632
          %v877 = vmul.f32 %v861, 1.6732632
          %v878 = vmul.f32 %v862, 1.6732632
          %v879 = vsel %vm799, %v721, %v863
          %v880 = vsel %vm800, %v726, %v864
          %v881 = vsel %vm801, %v731, %v865
          %v882 = vsel %vm802, %v736, %v866
          %v883 = vsel %vm803, %v741, %v867
          %v884 = vsel %vm804, %v746, %v868
          %v885 = vsel %vm805, %v751, %v869
          %v886 = vsel %vm806, %v756, %v870
          %v887 = vsel %vm807, %v761, %v871
          %v888 = vsel %vm808, %v766, %v872
          %v889 = vsel %vm809, %v771, %v873
          %v890 = vsel %vm810, %v776, %v874
          %v891 = vsel %vm811, %v781, %v875
          %v892 = vsel %vm812, %v786, %v876
          %v893 = vsel %vm813, %v791, %v877
          %v894 = vsel %vm814, %v796, %v878
          %v895 = vmul.f32 %v879, 1.050701
          %v896 = vmul.f32 %v880, 1.050701
          %v897 = vmul.f32 %v881, 1.050701
          %v898 = vmul.f32 %v882, 1.050701
          %v899 = vmul.f32 %v883, 1.050701
          %v900 = vmul.f32 %v884, 1.050701
          %v901 = vmul.f32 %v885, 1.050701
          %v902 = vmul.f32 %v886, 1.050701
          %v903 = vmul.f32 %v887, 1.050701
          %v904 = vmul.f32 %v888, 1.050701
          %v905 = vmul.f32 %v889, 1.050701
          %v906 = vmul.f32 %v890, 1.050701
          %v907 = vmul.f32 %v891, 1.050701
          %v908 = vmul.f32 %v892, 1.050701
          %v909 = vmul.f32 %v893, 1.050701
          %v910 = vmul.f32 %v894, 1.050701
          %911 = vst.msk [vmem:[%s396] sm:$0xff] %vm435, %v895
          %912 = vst.msk [vmem:[%s396 + $0x8] sm:$0xff] %vm435, %v896
          %913 = vst.msk [vmem:[%s396 + $0x10] sm:$0xff] %vm435, %v897
          %914 = vst.msk [vmem:[%s396 + $0x18] sm:$0xff] %vm435, %v898
          %915 = vst.msk [vmem:[%s396 + $0x20] sm:$0xff] %vm435, %v899
          %916 = vst.msk [vmem:[%s396 + $0x28] sm:$0xff] %vm435, %v900
          %917 = vst.msk [vmem:[%s396 + $0x30] sm:$0xff] %vm435, %v901
          %918 = vst.msk [vmem:[%s396 + $0x38] sm:$0xff] %vm435, %v902
          %919 = vst.msk [vmem:[%s396 + $0x40] sm:$0xff] %vm435, %v903
          %920 = vst.msk [vmem:[%s396 + $0x48] sm:$0xff] %vm435, %v904
          %921 = vst.msk [vmem:[%s396 + $0x50] sm:$0xff] %vm435, %v905
          %922 = vst.msk [vmem:[%s396 + $0x58] sm:$0xff] %vm435, %v906
          %923 = vst.msk [vmem:[%s396 + $0x60] sm:$0xff] %vm435, %v907
          %924 = vst.msk [vmem:[%s396 + $0x68] sm:$0xff] %vm435, %v908
          %925 = vst.msk [vmem:[%s396 + $0x70] sm:$0xff] %vm435, %v909
          %926 = vst.msk [vmem:[%s396 + $0x78] sm:$0xff] %vm435, %v910
          %927 = vmatprep.subr.mxu0 0.0
          %928 = vmatpush1.msra.mxu0 0.0
          %929 = vmatprep.subr.mxu0 0.0
          %930 = vmatpush1.msra.mxu0 0.0
          %931 = vmatprep.subr.mxu0 0.0
          %932 = vmatpush1.msra.mxu0 0.0
          %933 = vmatprep.subr.mxu0 0.0
          %934 = vmatpush1.msra.mxu0 0.0
          %935 = vmatprep.subr.mxu0 0.0
          %936 = vmatpush1.msra.mxu0 0.0
          %937 = vmatprep.subr.mxu0 0.0
          %938 = vmatpush1.msra.mxu0 0.0
          %939 = vmatprep.subr.mxu0 0.0
          %940 = vmatpush1.msra.mxu0 0.0
          %941 = vmatprep.subr.mxu0 0.0
          %942 = vmatpush1.msra.mxu0 0.0
          %943 = vmatprep.subr.mxu0 0.0
          %944 = vmatpush1.msra.mxu0 0.0
          %945 = vmatprep.subr.mxu0 0.0
          %946 = vmatpush1.msra.mxu0 0.0
          %947 = vmatprep.subr.mxu0 0.0
          %948 = vmatpush1.msra.mxu0 0.0
          %949 = vmatprep.subr.mxu0 0.0
          %950 = vmatpush1.msra.mxu0 0.0
          %951 = vmatprep.subr.mxu0 0.0
          %952 = vmatpush1.msra.mxu0 0.0
          %953 = vmatprep.subr.mxu0 0.0
          %954 = vmatpush1.msra.mxu0 0.0
          %955 = vmatprep.subr.mxu0 0.0
          %956 = vmatpush1.msra.mxu0 %v553
          %957 = vmatprep.subr.mxu0 0.0
          %958 = vmatpush1.msra.mxu0 %v552
          %959 = vmatprep.subr.mxu0 0.0
          %960 = vmatpush2.msra.mxu0 0.0
          %961 = vmatprep.subr.mxu0 0.0
          %962 = vmatpush2.msra.mxu0 0.0
          %963 = vmatprep.subr.mxu0 0.0
          %964 = vmatpush2.msra.mxu0 0.0
          %965 = vmatprep.subr.mxu0 0.0
          %966 = vmatpush2.msra.mxu0 0.0
          %967 = vmatprep.subr.mxu0 0.0
          %968 = vmatpush2.msra.mxu0 0.0
          %969 = vmatprep.subr.mxu0 0.0
          %970 = vmatpush2.msra.mxu0 0.0
          %971 = vmatprep.subr.mxu0 0.0
          %972 = vmatpush2.msra.mxu0 0.0
          %973 = vmatprep.subr.mxu0 0.0
          %974 = vmatpush2.msra.mxu0 0.0
          %975 = vmatprep.subr.mxu0 0.0
          %976 = vmatpush2.msra.mxu0 0.0
          %977 = vmatprep.subr.mxu0 0.0
          %978 = vmatpush2.msra.mxu0 0.0
          %979 = vmatprep.subr.mxu0 0.0
          %980 = vmatpush2.msra.mxu0 0.0
          %981 = vmatprep.subr.mxu0 0.0
          %982 = vmatpush2.msra.mxu0 0.0
          %983 = vmatprep.subr.mxu0 0.0
          %984 = vmatpush2.msra.mxu0 0.0
          %985 = vmatprep.subr.mxu0 0.0
          %986 = vmatpush2.msra.mxu0 0.0
          %987 = vmatprep.subr.mxu0 0.0
          %988 = vmatpush2.msra.mxu0 0.0
          %989 = vmatprep.subr.mxu0 0.0
          %990 = vmatpush2.msra.mxu0 0.0
          %991 = vmatprep.mubr.f32.mxu0 0.0
          %992 = vmatmul.mubr.f32.gmra.mxu0 %v607
          %v993 = vpop.f32.mrf.mxu0
          %v994 = vadd.f32 0.0, %v993
          %v995 = vpop.f32.mrf.mxu0
          %996 = vmatprep.mubr.f32.mxu0 0.0
          %997 = vmatmul.mubr.f32.gmra.mxu0 %v610
          %v998 = vpop.f32.mrf.mxu0
          %v999 = vadd.f32 0.0, %v998
          %v1000 = vpop.f32.mrf.mxu0
          %1001 = vmatprep.mubr.f32.mxu0 0.0
          %1002 = vmatmul.mubr.f32.gmra.mxu0 %v613
          %v1003 = vpop.f32.mrf.mxu0
          %v1004 = vadd.f32 0.0, %v1003
          %v1005 = vpop.f32.mrf.mxu0
          %1006 = vmatprep.mubr.f32.mxu0 0.0
          %1007 = vmatmul.mubr.f32.gmra.mxu0 %v616
          %v1008 = vpop.f32.mrf.mxu0
          %v1009 = vadd.f32 0.0, %v1008
          %v1010 = vpop.f32.mrf.mxu0
          %1011 = vmatprep.mubr.f32.mxu0 0.0
          %1012 = vmatmul.mubr.f32.gmra.mxu0 %v619
          %v1013 = vpop.f32.mrf.mxu0
          %v1014 = vadd.f32 0.0, %v1013
          %v1015 = vpop.f32.mrf.mxu0
          %1016 = vmatprep.mubr.f32.mxu0 0.0
          %1017 = vmatmul.mubr.f32.gmra.mxu0 %v622
          %v1018 = vpop.f32.mrf.mxu0
          %v1019 = vadd.f32 0.0, %v1018
          %v1020 = vpop.f32.mrf.mxu0
          %1021 = vmatprep.mubr.f32.mxu0 0.0
          %1022 = vmatmul.mubr.f32.gmra.mxu0 %v625
          %v1023 = vpop.f32.mrf.mxu0
          %v1024 = vadd.f32 0.0, %v1023
          %v1025 = vpop.f32.mrf.mxu0
          %1026 = vmatprep.mubr.f32.mxu0 0.0
          %1027 = vmatmul.mubr.f32.gmra.mxu0 %v628
          %v1028 = vpop.f32.mrf.mxu0
          %v1029 = vadd.f32 0.0, %v1028
          %v1030 = vpop.f32.mrf.mxu0
          %1031 = vmatprep.mubr.f32.mxu0 0.0
          %1032 = vmatmul.mubr.f32.gmra.mxu0 %v631
          %v1033 = vpop.f32.mrf.mxu0
          %v1034 = vadd.f32 0.0, %v1033
          %v1035 = vpop.f32.mrf.mxu0
          %1036 = vmatprep.mubr.f32.mxu0 0.0
          %1037 = vmatmul.mubr.f32.gmra.mxu0 %v634
          %v1038 = vpop.f32.mrf.mxu0
          %v1039 = vadd.f32 0.0, %v1038
          %v1040 = vpop.f32.mrf.mxu0
          %1041 = vmatprep.mubr.f32.mxu0 0.0
          %1042 = vmatmul.mubr.f32.gmra.mxu0 %v637
          %v1043 = vpop.f32.mrf.mxu0
          %v1044 = vadd.f32 0.0, %v1043
          %v1045 = vpop.f32.mrf.mxu0
          %1046 = vmatprep.mubr.f32.mxu0 0.0
          %1047 = vmatmul.mubr.f32.gmra.mxu0 %v640
          %v1048 = vpop.f32.mrf.mxu0
          %v1049 = vadd.f32 0.0, %v1048
          %v1050 = vpop.f32.mrf.mxu0
          %1051 = vmatprep.mubr.f32.mxu0 0.0
          %1052 = vmatmul.mubr.f32.gmra.mxu0 %v643
          %v1053 = vpop.f32.mrf.mxu0
          %v1054 = vadd.f32 0.0, %v1053
          %v1055 = vpop.f32.mrf.mxu0
          %1056 = vmatprep.mubr.f32.mxu0 0.0
          %1057 = vmatmul.mubr.f32.gmra.mxu0 %v646
          %v1058 = vpop.f32.mrf.mxu0
          %v1059 = vadd.f32 0.0, %v1058
          %v1060 = vpop.f32.mrf.mxu0
          %1061 = vmatprep.mubr.f32.mxu0 0.0
          %1062 = vmatmul.mubr.f32.gmra.mxu0 %v649
          %v1063 = vpop.f32.mrf.mxu0
          %v1064 = vadd.f32 0.0, %v1063
          %v1065 = vpop.f32.mrf.mxu0
          %1066 = vmatprep.mubr.f32.mxu0 0.0
          %1067 = vmatmul.mubr.f32.gmra.mxu0 %v652
          %v1068 = vpop.f32.mrf.mxu0
          %v1069 = vadd.f32 0.0, %v1068
          %v1070 = vpop.f32.mrf.mxu0
          %1071 = vdwg.mxu0
          %v1072 = vmul.f32 %v994, %v994
          %v1073 = vmul.f32 %v999, %v999
          %v1074 = vmul.f32 %v1004, %v1004
          %v1075 = vmul.f32 %v1009, %v1009
          %v1076 = vmul.f32 %v1014, %v1014
          %v1077 = vmul.f32 %v1019, %v1019
          %v1078 = vmul.f32 %v1024, %v1024
          %v1079 = vmul.f32 %v1029, %v1029
          %v1080 = vmul.f32 %v1034, %v1034
          %v1081 = vmul.f32 %v1039, %v1039
          %v1082 = vmul.f32 %v1044, %v1044
          %v1083 = vmul.f32 %v1049, %v1049
          %v1084 = vmul.f32 %v1054, %v1054
          %v1085 = vmul.f32 %v1059, %v1059
          %v1086 = vmul.f32 %v1064, %v1064
          %v1087 = vmul.f32 %v1069, %v1069
          %v1088 = vadd.f32 %v1072, %v1073
          %v1089 = vadd.f32 %v1088, %v1074
          %v1090 = vadd.f32 %v1089, %v1075
          %v1091 = vadd.f32 %v1090, %v1076
          %v1092 = vadd.f32 %v1091, %v1077
          %v1093 = vadd.f32 %v1092, %v1078
          %v1094 = vadd.f32 %v1093, %v1079
          %v1095 = vadd.f32 %v1094, %v1080
          %v1096 = vadd.f32 %v1095, %v1081
          %v1097 = vadd.f32 %v1096, %v1082
          %v1098 = vadd.f32 %v1097, %v1083
          %v1099 = vadd.f32 %v1098, %v1084
          %v1100 = vadd.f32 %v1099, %v1085
          %v1101 = vadd.f32 %v1100, %v1086
          %v1102 = vadd.f32 %v1101, %v1087
          %1103 = vadd.xlane.f32.xlu0 %v1102
          %v1104 = vpop.xlane.xlu0 %1103
          %v1105 = vrot.slane %v1104, 4
          %v1106 = vadd.f32 %v1104, %v1105
          %v1107 = vrot.slane %v1106, 2
          %v1108 = vadd.f32 %v1106, %v1107
          %v1109 = vrot.slane %v1108, 1
          %v1110 = vadd.f32 %v1108, %v1109
          %s1111 = vtos %v1110
          %v1112 = vstv %s1111
          %v1113 = vrsqrt.pop %v1112
          %v1114 = vmul.f32 %v1112, %v1113
          %vm1115 = vcmp.eq.f32.partialorder %v1112, inf
          %v1116 = vsel %vm1115, %v1112, %v1114
          %vm1117 = vcmp.eq.f32.partialorder %v1112, 0.0
          %v1118 = vand.u32 %v1112, 2147483648
          %v1119 = vsel %vm1117, %v1118, %v1116
          %s1120 = vtos %v1119
          %vm1121 = vcmp.eq.s32.totalorder %v401, %v399
          %vm1122 = vcmp.eq.s32.totalorder %v402, %v399
          %vm1123 = vcmp.eq.s32.totalorder %v403, %v399
          %vm1124 = vcmp.eq.s32.totalorder %v404, %v399
          %vm1125 = vcmp.eq.s32.totalorder %v405, %v399
          %vm1126 = vcmp.eq.s32.totalorder %v406, %v399
          %vm1127 = vcmp.eq.s32.totalorder %v407, %v399
          %vm1128 = vcmp.eq.s32.totalorder %v408, %v399
          %vm1129 = vcmp.eq.s32.totalorder %v409, %v399
          %vm1130 = vcmp.eq.s32.totalorder %v410, %v399
          %vm1131 = vcmp.eq.s32.totalorder %v411, %v399
          %vm1132 = vcmp.eq.s32.totalorder %v412, %v399
          %vm1133 = vcmp.eq.s32.totalorder %v413, %v399
          %vm1134 = vcmp.eq.s32.totalorder %v414, %v399
          %vm1135 = vcmp.eq.s32.totalorder %v415, %v399
          %vm1136 = vcmp.eq.s32.totalorder %v416, %v399
          %vm1137 = vcmp.lt.s32.totalorder %v401, 8
          %vm1138 = vcmp.lt.s32.totalorder %v402, 8
          %vm1139 = vcmp.lt.s32.totalorder %v403, 8
          %vm1140 = vcmp.lt.s32.totalorder %v404, 8
          %vm1141 = vcmp.lt.s32.totalorder %v405, 8
          %vm1142 = vcmp.lt.s32.totalorder %v406, 8
          %vm1143 = vcmp.lt.s32.totalorder %v407, 8
          %vm1144 = vcmp.lt.s32.totalorder %v408, 8
          %vm1145 = vcmp.lt.s32.totalorder %v409, 8
          %vm1146 = vcmp.lt.s32.totalorder %v410, 8
          %vm1147 = vcmp.lt.s32.totalorder %v411, 8
          %vm1148 = vcmp.lt.s32.totalorder %v412, 8
          %vm1149 = vcmp.lt.s32.totalorder %v413, 8
          %vm1150 = vcmp.lt.s32.totalorder %v414, 8
          %vm1151 = vcmp.lt.s32.totalorder %v415, 8
          %vm1152 = vcmp.lt.s32.totalorder %v416, 8
          %v1153 = vsel %vm1137, 1, 0
          %v1154 = vsel %vm1138, 1, 0
          %v1155 = vsel %vm1139, 1, 0
          %v1156 = vsel %vm1140, 1, 0
          %v1157 = vsel %vm1141, 1, 0
          %v1158 = vsel %vm1142, 1, 0
          %v1159 = vsel %vm1143, 1, 0
          %v1160 = vsel %vm1144, 1, 0
          %v1161 = vsel %vm1145, 1, 0
          %v1162 = vsel %vm1146, 1, 0
          %v1163 = vsel %vm1147, 1, 0
          %v1164 = vsel %vm1148, 1, 0
          %v1165 = vsel %vm1149, 1, 0
          %v1166 = vsel %vm1150, 1, 0
          %v1167 = vsel %vm1151, 1, 0
          %v1168 = vsel %vm1152, 1, 0
          %vm1169 = vcmp.eq.s32.totalorder %v1153, 1
          %vm1170 = vcmp.eq.s32.totalorder %v1154, 1
          %vm1171 = vcmp.eq.s32.totalorder %v1155, 1
          %vm1172 = vcmp.eq.s32.totalorder %v1156, 1
          %vm1173 = vcmp.eq.s32.totalorder %v1157, 1
          %vm1174 = vcmp.eq.s32.totalorder %v1158, 1
          %vm1175 = vcmp.eq.s32.totalorder %v1159, 1
          %vm1176 = vcmp.eq.s32.totalorder %v1160, 1
          %vm1177 = vcmp.eq.s32.totalorder %v1161, 1
          %vm1178 = vcmp.eq.s32.totalorder %v1162, 1
          %vm1179 = vcmp.eq.s32.totalorder %v1163, 1
          %vm1180 = vcmp.eq.s32.totalorder %v1164, 1
          %vm1181 = vcmp.eq.s32.totalorder %v1165, 1
          %vm1182 = vcmp.eq.s32.totalorder %v1166, 1
          %vm1183 = vcmp.eq.s32.totalorder %v1167, 1
          %vm1184 = vcmp.eq.s32.totalorder %v1168, 1
          %vm1185 = vmand %vm1121, %vm1169
          %vm1186 = vmand %vm1122, %vm1170
          %vm1187 = vmand %vm1123, %vm1171
          %vm1188 = vmand %vm1124, %vm1172
          %vm1189 = vmand %vm1125, %vm1173
          %vm1190 = vmand %vm1126, %vm1174
          %vm1191 = vmand %vm1127, %vm1175
          %vm1192 = vmand %vm1128, %vm1176
          %vm1193 = vmand %vm1129, %vm1177
          %vm1194 = vmand %vm1130, %vm1178
          %vm1195 = vmand %vm1131, %vm1179
          %vm1196 = vmand %vm1132, %vm1180
          %vm1197 = vmand %vm1133, %vm1181
          %vm1198 = vmand %vm1134, %vm1182
          %vm1199 = vmand %vm1135, %vm1183
          %vm1200 = vmand %vm1136, %vm1184
          %v1201 = vsel %vm1185, 1, 0
          %v1202 = vsel %vm1186, 1, 0
          %v1203 = vsel %vm1187, 1, 0
          %v1204 = vsel %vm1188, 1, 0
          %v1205 = vsel %vm1189, 1, 0
          %v1206 = vsel %vm1190, 1, 0
          %v1207 = vsel %vm1191, 1, 0
          %v1208 = vsel %vm1192, 1, 0
          %v1209 = vsel %vm1193, 1, 0
          %v1210 = vsel %vm1194, 1, 0
          %v1211 = vsel %vm1195, 1, 0
          %v1212 = vsel %vm1196, 1, 0
          %v1213 = vsel %vm1197, 1, 0
          %v1214 = vsel %vm1198, 1, 0
          %v1215 = vsel %vm1199, 1, 0
          %v1216 = vsel %vm1200, 1, 0
          %v1217 = vcvt.s32.f32 %v1201
          %v1218 = vcvt.s32.f32 %v1202
          %v1219 = vcvt.s32.f32 %v1203
          %v1220 = vcvt.s32.f32 %v1204
          %v1221 = vcvt.s32.f32 %v1205
          %v1222 = vcvt.s32.f32 %v1206
          %v1223 = vcvt.s32.f32 %v1207
          %v1224 = vcvt.s32.f32 %v1208
          %v1225 = vcvt.s32.f32 %v1209
          %v1226 = vcvt.s32.f32 %v1210
          %v1227 = vcvt.s32.f32 %v1211
          %v1228 = vcvt.s32.f32 %v1212
          %v1229 = vcvt.s32.f32 %v1213
          %v1230 = vcvt.s32.f32 %v1214
          %v1231 = vcvt.s32.f32 %v1215
          %v1232 = vcvt.s32.f32 %v1216
          %v1233 = vstv %s1120
          %v1234 = vrcp.pop %v1233
          %s1235 = vtos %v1234
          %v1236 = vstv %s1235
          %v1237 = vmul.f32 %v994, %v1236
          %v1238 = vmul.f32 %v999, %v1236
          %v1239 = vmul.f32 %v1004, %v1236
          %v1240 = vmul.f32 %v1009, %v1236
          %v1241 = vmul.f32 %v1014, %v1236
          %v1242 = vmul.f32 %v1019, %v1236
          %v1243 = vmul.f32 %v1024, %v1236
          %v1244 = vmul.f32 %v1029, %v1236
          %v1245 = vmul.f32 %v1034, %v1236
          %v1246 = vmul.f32 %v1039, %v1236
          %v1247 = vmul.f32 %v1044, %v1236
          %v1248 = vmul.f32 %v1049, %v1236
          %v1249 = vmul.f32 %v1054, %v1236
          %v1250 = vmul.f32 %v1059, %v1236
          %v1251 = vmul.f32 %v1064, %v1236
          %v1252 = vmul.f32 %v1069, %v1236
          %v1253 = vmul.f32 %v1217, 0.35355338
          %v1254 = vmul.f32 %v1218, 0.35355338
          %v1255 = vmul.f32 %v1219, 0.35355338
          %v1256 = vmul.f32 %v1220, 0.35355338
          %v1257 = vmul.f32 %v1221, 0.35355338
          %v1258 = vmul.f32 %v1222, 0.35355338
          %v1259 = vmul.f32 %v1223, 0.35355338
          %v1260 = vmul.f32 %v1224, 0.35355338
          %v1261 = vmul.f32 %v1225, 0.35355338
          %v1262 = vmul.f32 %v1226, 0.35355338
          %v1263 = vmul.f32 %v1227, 0.35355338
          %v1264 = vmul.f32 %v1228, 0.35355338
          %v1265 = vmul.f32 %v1229, 0.35355338
          %v1266 = vmul.f32 %v1230, 0.35355338
          %v1267 = vmul.f32 %v1231, 0.35355338
          %v1268 = vmul.f32 %v1232, 0.35355338
          %v1269 = vsub.f32 %v1237, %v1253
          %v1270 = vsub.f32 %v1238, %v1254
          %v1271 = vsub.f32 %v1239, %v1255
          %v1272 = vsub.f32 %v1240, %v1256
          %v1273 = vsub.f32 %v1241, %v1257
          %v1274 = vsub.f32 %v1242, %v1258
          %v1275 = vsub.f32 %v1243, %v1259
          %v1276 = vsub.f32 %v1244, %v1260
          %v1277 = vsub.f32 %v1245, %v1261
          %v1278 = vsub.f32 %v1246, %v1262
          %v1279 = vsub.f32 %v1247, %v1263
          %v1280 = vsub.f32 %v1248, %v1264
          %v1281 = vsub.f32 %v1249, %v1265
          %v1282 = vsub.f32 %v1250, %v1266
          %v1283 = vsub.f32 %v1251, %v1267
          %v1284 = vsub.f32 %v1252, %v1268
          %v1285 = vmul.f32 %v1269, %v1269
          %v1286 = vmul.f32 %v1270, %v1270
          %v1287 = vmul.f32 %v1271, %v1271
          %v1288 = vmul.f32 %v1272, %v1272
          %v1289 = vmul.f32 %v1273, %v1273
          %v1290 = vmul.f32 %v1274, %v1274
          %v1291 = vmul.f32 %v1275, %v1275
          %v1292 = vmul.f32 %v1276, %v1276
          %v1293 = vmul.f32 %v1277, %v1277
          %v1294 = vmul.f32 %v1278, %v1278
          %v1295 = vmul.f32 %v1279, %v1279
          %v1296 = vmul.f32 %v1280, %v1280
          %v1297 = vmul.f32 %v1281, %v1281
          %v1298 = vmul.f32 %v1282, %v1282
          %v1299 = vmul.f32 %v1283, %v1283
          %v1300 = vmul.f32 %v1284, %v1284
          %v1301 = vadd.f32 %v1285, %v1286
          %v1302 = vadd.f32 %v1301, %v1287
          %v1303 = vadd.f32 %v1302, %v1288
          %v1304 = vadd.f32 %v1303, %v1289
          %v1305 = vadd.f32 %v1304, %v1290
          %v1306 = vadd.f32 %v1305, %v1291
          %v1307 = vadd.f32 %v1306, %v1292
          %v1308 = vadd.f32 %v1307, %v1293
          %v1309 = vadd.f32 %v1308, %v1294
          %v1310 = vadd.f32 %v1309, %v1295
          %v1311 = vadd.f32 %v1310, %v1296
          %v1312 = vadd.f32 %v1311, %v1297
          %v1313 = vadd.f32 %v1312, %v1298
          %v1314 = vadd.f32 %v1313, %v1299
          %v1315 = vadd.f32 %v1314, %v1300
          %1316 = vadd.xlane.f32.xlu0 %v1315
          %v1317 = vpop.xlane.xlu0 %1316
          %v1318 = vrot.slane %v1317, 4
          %v1319 = vadd.f32 %v1317, %v1318
          %v1320 = vrot.slane %v1319, 2
          %v1321 = vadd.f32 %v1319, %v1320
          %v1322 = vrot.slane %v1321, 1
          %v1323 = vadd.f32 %v1321, %v1322
          %s1324 = vtos %v1323
          %v1325 = vstv %s1324
          %v1326 = vrsqrt.pop %v1325
          %v1327 = vmul.f32 %v1325, %v1326
          %vm1328 = vcmp.eq.f32.partialorder %v1325, inf
          %v1329 = vsel %vm1328, %v1325, %v1327
          %vm1330 = vcmp.eq.f32.partialorder %v1325, 0.0
          %v1331 = vand.u32 %v1325, 2147483648
          %v1332 = vsel %vm1330, %v1331, %v1329
          %s1333 = vtos %v1332
          %v1334 = vadd.f32 %v552, %v553
          %v1335 = vrot.slane %v1334, 4
          %v1336 = vadd.f32 %v1334, %v1335
          %v1337 = vrot.slane %v1336, 2
          %v1338 = vadd.f32 %v1336, %v1337
          %v1339 = vrot.slane %v1338, 1
          %v1340 = vadd.f32 %v1338, %v1339
          %1341 = vrot.lane.b32.xlu0 %v421, 96
          %v1342 = vpop.permute.xlu0 %1341
          %1343 = vrot.lane.b32.xlu0 %v422, 96
          %v1344 = vpop.permute.xlu0 %1343
          %vm1347 = vcmask 7168
          %v1348 = vsel %vm1347, %v1342, 0.0
          %v1349 = vsel %vm1347, %v1344, 0.0
          %v1350 = vadd.f32 %v1348, %v1349
          %1351 = vadd.xlane.f32.xlu0 %v1350
          %v1352 = vpop.xlane.xlu0 %1351
          %v1353 = vrot.slane %v1352, 4
          %v1354 = vadd.f32 %v1352, %v1353
          %v1355 = vrot.slane %v1354, 2
          %v1356 = vadd.f32 %v1354, %v1355
          %v1357 = vrot.slane %v1356, 1
          %v1358 = vadd.f32 %v1356, %v1357
          %s1359 = vtos %v1358
          %v1360 = vmul.f32 %v1340, %v1340
          %v1361 = vsel %vm442, %v1360, 0.0
          %1362 = vadd.xlane.f32.xlu0 %v1361
          %v1363 = vpop.xlane.xlu0 %1362
          %v1364 = vrot.slane %v1363, 4
          %v1365 = vadd.f32 %v1363, %v1364
          %v1366 = vrot.slane %v1365, 2
          %v1367 = vadd.f32 %v1365, %v1366
          %v1368 = vrot.slane %v1367, 1
          %v1369 = vadd.f32 %v1367, %v1368
          %s1370 = vtos %v1369
          %v1371 = vstv %s1370
          %v1372 = vrsqrt.pop %v1371
          %v1373 = vmul.f32 %v1371, %v1372
          %vm1374 = vcmp.eq.f32.partialorder %v1371, inf
          %v1375 = vsel %vm1374, %v1371, %v1373
          %vm1376 = vcmp.eq.f32.partialorder %v1371, 0.0
          %v1377 = vand.u32 %v1371, 2147483648
          %v1378 = vsel %vm1376, %v1377, %v1375
          %s1379 = vtos %v1378
          %v1380 = vstv %s1359
          %v1381 = vrcp.pop %v1380
          %s1382 = vtos %v1381
          %s1383 = smul.f32 %s1379, %s1382
          %s1384 = smul.f32 %s1383, 2.828427
          %vm1385 = vcmp.eq.s32.totalorder %v399, 1
          %v1386 = vstv %s1333
          %v1387 = vsel %vm1385, %v1386, 0.0
          %vm1388 = vcmp.eq.s32.totalorder %v399, 2
          %v1389 = vstv %s1384
          %v1390 = vsel %vm1388, %v1389, 0.0
          %v1391 = vadd.f32 %v1387, %v1390
          %1392 = vst [vmem:[%s390] sm:$0x1] %v1391
          %1393 = vst [vmem:[#allocation3] sm:$0xff] 0.0
          %1394 = vst [vmem:[#allocation3 + $0x8] sm:$0xff] 0.0
          %1395 = vst [vmem:[#allocation3 + $0x10] sm:$0xff] 0.0
          %1396 = vst [vmem:[#allocation3 + $0x18] sm:$0xff] 0.0
          %1397 = vst [vmem:[#allocation3 + $0x20] sm:$0xff] 0.0
          %1398 = vst [vmem:[#allocation3 + $0x28] sm:$0xff] 0.0
          %1399 = vst [vmem:[#allocation3 + $0x30] sm:$0xff] 0.0
          %1400 = vst [vmem:[#allocation3 + $0x38] sm:$0xff] 0.0
          %1401 = vst [vmem:[#allocation3 + $0x40] sm:$0xff] 0.0
          %1402 = vst [vmem:[#allocation3 + $0x48] sm:$0xff] 0.0
          %1403 = vst [vmem:[#allocation3 + $0x50] sm:$0xff] 0.0
          %1404 = vst [vmem:[#allocation3 + $0x58] sm:$0xff] 0.0
          %1405 = vst [vmem:[#allocation3 + $0x60] sm:$0xff] 0.0
          %1406 = vst [vmem:[#allocation3 + $0x68] sm:$0xff] 0.0
          %1407 = vst [vmem:[#allocation3 + $0x70] sm:$0xff] 0.0
          %1408 = vst [vmem:[#allocation3 + $0x78] sm:$0xff] 0.0
        $region52: #{tpu_custom_call.1} parent=35 // pred_fallthru
          _
        %v1409 = vld [vmem:[%s337] sm:$0xff]
        %v1410 = vld [vmem:[%s337 + $0x8] sm:$0xff]
        %v1411 = vpack.c.bf16 %v1410, %v1409
        %v1412 = vld [vmem:[#allocation2] sm:$0xf]
        %v1413 = vld [vmem:[#allocation2 + $0x4] sm:$0xf]
        %v1416 = vunpack.c.l.b16 %v1412
        %v1417 = vunpack.c.l.b16 %v1413
        %v1418 = vpack.c.b16 %v1417, %v1416
        %vm1420 = vcmask 130048
        %v1422 = vsel %vm1420, %v1411, 0
        %1424 = vmatprep.subr.bf16.mxu0 0
        %1425 = vmatpush1.bf16.msra.mxu0 0
        %1426 = vmatprep.subr.bf16.mxu0 0
        %1427 = vmatpush1.bf16.msra.mxu0 0
        %1428 = vmatprep.subr.bf16.mxu0 0
        %1429 = vmatpush1.bf16.msra.mxu0 0
        %1430 = vmatprep.subr.bf16.mxu0 0
        %1431 = vmatpush1.bf16.msra.mxu0 0
        %1432 = vmatprep.subr.bf16.mxu0 0
        %1433 = vmatpush1.bf16.msra.mxu0 0
        %1434 = vmatprep.subr.bf16.mxu0 0
        %1435 = vmatpush1.bf16.msra.mxu0 0
        %1436 = vmatprep.subr.bf16.mxu0 0
        %1437 = vmatpush1.bf16.msra.mxu0 0
        %1438 = vmatprep.subr.bf16.mxu0 0
        %1439 = vmatpush1.bf16.msra.mxu0 %v1418
        %1440 = vmatprep.subr.bf16.mxu0 0
        %1441 = vmatpush2.bf16.msra.mxu0 0
        %1442 = vmatprep.subr.bf16.mxu0 0
        %1443 = vmatpush2.bf16.msra.mxu0 0
        %1444 = vmatprep.subr.bf16.mxu0 0
        %1445 = vmatpush2.bf16.msra.mxu0 0
        %1446 = vmatprep.subr.bf16.mxu0 0
        %1447 = vmatpush2.bf16.msra.mxu0 0
        %1448 = vmatprep.subr.bf16.mxu0 0
        %1449 = vmatpush2.bf16.msra.mxu0 0
        %1450 = vmatprep.subr.bf16.mxu0 0
        %1451 = vmatpush2.bf16.msra.mxu0 0
        %1452 = vmatprep.subr.bf16.mxu0 0
        %1453 = vmatpush2.bf16.msra.mxu0 0
        %1454 = vmatprep.subr.bf16.mxu0 0
        %1455 = vmatpush2.bf16.msra.mxu0 0
        %1456 = vmatprep.mubr.bf16.mxu0 0
        %1457 = vmatmul.mubr.bf16.gmra.mxu0 %v1422
        %v1458 = vpop.f32.mrf.mxu0
        %v1459 = vadd.f32 0.0, %v1458
        %v1460 = vpop.f32.mrf.mxu0
        %v1461 = vpop.f32.mrf.mxu0
        %v1462 = vadd.f32 0.0, %v1461
        %v1463 = vpop.f32.mrf.mxu0
        %1464 = vdwg.mxu0
        %s1465 = smul.u32 %s36, 16
        %s1466 = scalar_lea.vmem %s370, %s1465 [#allocation10]
        %v1467 = vld [vmem:[%s1466] sm:$0xff]
        %v1468 = vld [vmem:[%s1466 + $0x8] sm:$0xff]
        %v1469 = vld [vmem:[#allocation3] sm:$0xff]
        %v1470 = vld [vmem:[#allocation3 + $0x8] sm:$0xff]
        %v1471 = vld [vmem:[#allocation3 + $0x10] sm:$0xff]
        %v1472 = vld [vmem:[#allocation3 + $0x18] sm:$0xff]
        %v1473 = vld [vmem:[#allocation3 + $0x20] sm:$0xff]
        %v1474 = vld [vmem:[#allocation3 + $0x28] sm:$0xff]
        %v1475 = vld [vmem:[#allocation3 + $0x30] sm:$0xff]
        %v1476 = vld [vmem:[#allocation3 + $0x38] sm:$0xff]
        %v1477 = vld [vmem:[#allocation3 + $0x40] sm:$0xff]
        %v1478 = vld [vmem:[#allocation3 + $0x48] sm:$0xff]
        %v1479 = vld [vmem:[#allocation3 + $0x50] sm:$0xff]
        %v1480 = vld [vmem:[#allocation3 + $0x58] sm:$0xff]
        %v1481 = vld [vmem:[#allocation3 + $0x60] sm:$0xff]
        %v1482 = vld [vmem:[#allocation3 + $0x68] sm:$0xff]
        %v1483 = vld [vmem:[#allocation3 + $0x70] sm:$0xff]
        %v1484 = vld [vmem:[#allocation3 + $0x78] sm:$0xff]
        %1485 = vxpose.xlu0.b32.start [1/16] %v1467, 128
        %1486 = vxpose.xlu0.b32.cont [2/16] %v1468, 128
        %1487 = vxpose.xlu0.b32.cont [3/16] 0.0, 128
        %1488 = vxpose.xlu0.b32.cont [4/16] 0.0, 128
        %1489 = vxpose.xlu0.b32.cont [5/16] 0.0, 128
        %1490 = vxpose.xlu0.b32.cont [6/16] 0.0, 128
        %1491 = vxpose.xlu0.b32.cont [7/16] 0.0, 128
        %1492 = vxpose.xlu0.b32.cont [8/16] 0.0, 128
        %1493 = vxpose.xlu0.b32.cont [9/16] 0.0, 128
        %1494 = vxpose.xlu0.b32.cont [10/16] 0.0, 128
        %1495 = vxpose.xlu0.b32.cont [11/16] 0.0, 128
        %1496 = vxpose.xlu0.b32.cont [12/16] 0.0, 128
        %1497 = vxpose.xlu0.b32.cont [13/16] 0.0, 128
        %1498 = vxpose.xlu0.b32.cont [14/16] 0.0, 128
        %1499 = vxpose.xlu0.b32.cont [15/16] 0.0, 128
        %1500 = vxpose.xlu0.b32.end [16/16] 0.0, 128
        %v1501 = vpop.trf.xlu0
        %v1502 = vpop.trf.xlu0
        %v1503 = vpop.trf.xlu0
        %v1504 = vpop.trf.xlu0
        %v1505 = vpop.trf.xlu0
        %v1506 = vpop.trf.xlu0
        %v1507 = vpop.trf.xlu0
        %v1508 = vpop.trf.xlu0
        %v1509 = vpop.trf.xlu0
        %v1510 = vpop.trf.xlu0
        %v1511 = vpop.trf.xlu0
        %v1512 = vpop.trf.xlu0
        %v1513 = vpop.trf.xlu0
        %v1514 = vpop.trf.xlu0
        %v1515 = vpop.trf.xlu0
        %v1516 = vpop.trf.xlu0
        %v1518 = vsel %vm1420, %v1501, 0
        %v1521 = vsel %vm1420, %v1502, 0
        %v1524 = vsel %vm1420, %v1503, 0
        %v1527 = vsel %vm1420, %v1504, 0
        %v1530 = vsel %vm1420, %v1505, 0
        %v1533 = vsel %vm1420, %v1506, 0
        %v1536 = vsel %vm1420, %v1507, 0
        %v1539 = vsel %vm1420, %v1508, 0
        %v1542 = vsel %vm1420, %v1509, 0
        %v1545 = vsel %vm1420, %v1510, 0
        %v1548 = vsel %vm1420, %v1511, 0
        %v1551 = vsel %vm1420, %v1512, 0
        %v1554 = vsel %vm1420, %v1513, 0
        %v1557 = vsel %vm1420, %v1514, 0
        %v1560 = vsel %vm1420, %v1515, 0
        %v1563 = vsel %vm1420, %v1516, 0
        %1565 = vmatprep.subr.mxu0 0.0
        %1566 = vmatpush1.msra.mxu0 0.0
        %1567 = vmatprep.subr.mxu0 0.0
        %1568 = vmatpush1.msra.mxu0 0.0
        %1569 = vmatprep.subr.mxu0 0.0
        %1570 = vmatpush1.msra.mxu0 0.0
        %1571 = vmatprep.subr.mxu0 0.0
        %1572 = vmatpush1.msra.mxu0 0.0
        %1573 = vmatprep.subr.mxu0 0.0
        %1574 = vmatpush1.msra.mxu0 0.0
        %1575 = vmatprep.subr.mxu0 0.0
        %1576 = vmatpush1.msra.mxu0 0.0
        %1577 = vmatprep.subr.mxu0 0.0
        %1578 = vmatpush1.msra.mxu0 0.0
        %1579 = vmatprep.subr.mxu0 0.0
        %1580 = vmatpush1.msra.mxu0 0.0
        %1581 = vmatprep.subr.mxu0 0.0
        %1582 = vmatpush1.msra.mxu0 0.0
        %1583 = vmatprep.subr.mxu0 0.0
        %1584 = vmatpush1.msra.mxu0 0.0
        %1585 = vmatprep.subr.mxu0 0.0
        %1586 = vmatpush1.msra.mxu0 0.0
        %1587 = vmatprep.subr.mxu0 0.0
        %1588 = vmatpush1.msra.mxu0 0.0
        %1589 = vmatprep.subr.mxu0 0.0
        %1590 = vmatpush1.msra.mxu0 0.0
        %1591 = vmatprep.subr.mxu0 0.0
        %1592 = vmatpush1.msra.mxu0 0.0
        %1593 = vmatprep.subr.mxu0 0.0
        %1594 = vmatpush1.msra.mxu0 %v1462
        %1595 = vmatprep.subr.mxu0 0.0
        %1596 = vmatpush1.msra.mxu0 %v1459
        %1597 = vmatprep.subr.mxu0 0.0
        %1598 = vmatpush2.msra.mxu0 0.0
        %1599 = vmatprep.subr.mxu0 0.0
        %1600 = vmatpush2.msra.mxu0 0.0
        %1601 = vmatprep.subr.mxu0 0.0
        %1602 = vmatpush2.msra.mxu0 0.0
        %1603 = vmatprep.subr.mxu0 0.0
        %1604 = vmatpush2.msra.mxu0 0.0
        %1605 = vmatprep.subr.mxu0 0.0
        %1606 = vmatpush2.msra.mxu0 0.0
        %1607 = vmatprep.subr.mxu0 0.0
        %1608 = vmatpush2.msra.mxu0 0.0
        %1609 = vmatprep.subr.mxu0 0.0
        %1610 = vmatpush2.msra.mxu0 0.0
        %1611 = vmatprep.subr.mxu0 0.0
        %1612 = vmatpush2.msra.mxu0 0.0
        %1613 = vmatprep.subr.mxu0 0.0
        %1614 = vmatpush2.msra.mxu0 0.0
        %1615 = vmatprep.subr.mxu0 0.0
        %1616 = vmatpush2.msra.mxu0 0.0
        %1617 = vmatprep.subr.mxu0 0.0
        %1618 = vmatpush2.msra.mxu0 0.0
        %1619 = vmatprep.subr.mxu0 0.0
        %1620 = vmatpush2.msra.mxu0 0.0
        %1621 = vmatprep.subr.mxu0 0.0
        %1622 = vmatpush2.msra.mxu0 0.0
        %1623 = vmatprep.subr.mxu0 0.0
        %1624 = vmatpush2.msra.mxu0 0.0
        %1625 = vmatprep.subr.mxu0 0.0
        %1626 = vmatpush2.msra.mxu0 0.0
        %1627 = vmatprep.subr.mxu0 0.0
        %1628 = vmatpush2.msra.mxu0 0.0
        %1629 = vmatprep.mubr.f32.mxu0 0.0
        %1630 = vmatmul.mubr.f32.gmra.mxu0 %v1518
        %v1631 = vpop.f32.mrf.mxu0
        %v1632 = vadd.f32 0.0, %v1631
        %v1633 = vpop.f32.mrf.mxu0
        %1634 = vmatprep.mubr.f32.mxu0 0.0
        %1635 = vmatmul.mubr.f32.gmra.mxu0 %v1521
        %v1636 = vpop.f32.mrf.mxu0
        %v1637 = vadd.f32 0.0, %v1636
        %v1638 = vpop.f32.mrf.mxu0
        %1639 = vmatprep.mubr.f32.mxu0 0.0
        %1640 = vmatmul.mubr.f32.gmra.mxu0 %v1524
        %v1641 = vpop.f32.mrf.mxu0
        %v1642 = vadd.f32 0.0, %v1641
        %v1643 = vpop.f32.mrf.mxu0
        %1644 = vmatprep.mubr.f32.mxu0 0.0
        %1645 = vmatmul.mubr.f32.gmra.mxu0 %v1527
        %v1646 = vpop.f32.mrf.mxu0
        %v1647 = vadd.f32 0.0, %v1646
        %v1648 = vpop.f32.mrf.mxu0
        %1649 = vmatprep.mubr.f32.mxu0 0.0
        %1650 = vmatmul.mubr.f32.gmra.mxu0 %v1530
        %v1651 = vpop.f32.mrf.mxu0
        %v1652 = vadd.f32 0.0, %v1651
        %v1653 = vpop.f32.mrf.mxu0
        %1654 = vmatprep.mubr.f32.mxu0 0.0
        %1655 = vmatmul.mubr.f32.gmra.mxu0 %v1533
        %v1656 = vpop.f32.mrf.mxu0
        %v1657 = vadd.f32 0.0, %v1656
        %v1658 = vpop.f32.mrf.mxu0
        %1659 = vmatprep.mubr.f32.mxu0 0.0
        %1660 = vmatmul.mubr.f32.gmra.mxu0 %v1536
        %v1661 = vpop.f32.mrf.mxu0
        %v1662 = vadd.f32 0.0, %v1661
        %v1663 = vpop.f32.mrf.mxu0
        %1664 = vmatprep.mubr.f32.mxu0 0.0
        %1665 = vmatmul.mubr.f32.gmra.mxu0 %v1539
        %v1666 = vpop.f32.mrf.mxu0
        %v1667 = vadd.f32 0.0, %v1666
        %v1668 = vpop.f32.mrf.mxu0
        %1669 = vmatprep.mubr.f32.mxu0 0.0
        %1670 = vmatmul.mubr.f32.gmra.mxu0 %v1542
        %v1671 = vpop.f32.mrf.mxu0
        %v1672 = vadd.f32 0.0, %v1671
        %v1673 = vpop.f32.mrf.mxu0
        %1674 = vmatprep.mubr.f32.mxu0 0.0
        %1675 = vmatmul.mubr.f32.gmra.mxu0 %v1545
        %v1676 = vpop.f32.mrf.mxu0
        %v1677 = vadd.f32 0.0, %v1676
        %v1678 = vpop.f32.mrf.mxu0
        %1679 = vmatprep.mubr.f32.mxu0 0.0
        %1680 = vmatmul.mubr.f32.gmra.mxu0 %v1548
        %v1681 = vpop.f32.mrf.mxu0
        %v1682 = vadd.f32 0.0, %v1681
        %v1683 = vpop.f32.mrf.mxu0
        %1684 = vmatprep.mubr.f32.mxu0 0.0
        %1685 = vmatmul.mubr.f32.gmra.mxu0 %v1551
        %v1686 = vpop.f32.mrf.mxu0
        %v1687 = vadd.f32 0.0, %v1686
        %v1688 = vpop.f32.mrf.mxu0
        %1689 = vmatprep.mubr.f32.mxu0 0.0
        %1690 = vmatmul.mubr.f32.gmra.mxu0 %v1554
        %v1691 = vpop.f32.mrf.mxu0
        %v1692 = vadd.f32 0.0, %v1691
        %v1693 = vpop.f32.mrf.mxu0
        %1694 = vmatprep.mubr.f32.mxu0 0.0
        %1695 = vmatmul.mubr.f32.gmra.mxu0 %v1557
        %v1696 = vpop.f32.mrf.mxu0
        %v1697 = vadd.f32 0.0, %v1696
        %v1698 = vpop.f32.mrf.mxu0
        %1699 = vmatprep.mubr.f32.mxu0 0.0
        %1700 = vmatmul.mubr.f32.gmra.mxu0 %v1560
        %v1701 = vpop.f32.mrf.mxu0
        %v1702 = vadd.f32 0.0, %v1701
        %v1703 = vpop.f32.mrf.mxu0
        %1704 = vmatprep.mubr.f32.mxu0 0.0
        %1705 = vmatmul.mubr.f32.gmra.mxu0 %v1563
        %v1706 = vpop.f32.mrf.mxu0
        %v1707 = vadd.f32 0.0, %v1706
        %v1708 = vpop.f32.mrf.mxu0
        %1709 = vdwg.mxu0
        %v1710 = vadd.f32 %v1469, %v1632
        %v1711 = vadd.f32 %v1470, %v1637
        %v1712 = vadd.f32 %v1471, %v1642
        %v1713 = vadd.f32 %v1472, %v1647
        %v1714 = vadd.f32 %v1473, %v1652
        %v1715 = vadd.f32 %v1474, %v1657
        %v1716 = vadd.f32 %v1475, %v1662
        %v1717 = vadd.f32 %v1476, %v1667
        %v1718 = vadd.f32 %v1477, %v1672
        %v1719 = vadd.f32 %v1478, %v1677
        %v1720 = vadd.f32 %v1479, %v1682
        %v1721 = vadd.f32 %v1480, %v1687
        %v1722 = vadd.f32 %v1481, %v1692
        %v1723 = vadd.f32 %v1482, %v1697
        %v1724 = vadd.f32 %v1483, %v1702
        %v1725 = vadd.f32 %v1484, %v1707
        %1726 = vst [vmem:[#allocation3] sm:$0xff] %v1710
        %1727 = vst [vmem:[#allocation3 + $0x8] sm:$0xff] %v1711
        %1728 = vst [vmem:[#allocation3 + $0x10] sm:$0xff] %v1712
        %1729 = vst [vmem:[#allocation3 + $0x18] sm:$0xff] %v1713
        %1730 = vst [vmem:[#allocation3 + $0x20] sm:$0xff] %v1714
        %1731 = vst [vmem:[#allocation3 + $0x28] sm:$0xff] %v1715
        %1732 = vst [vmem:[#allocation3 + $0x30] sm:$0xff] %v1716
        %1733 = vst [vmem:[#allocation3 + $0x38] sm:$0xff] %v1717
        %1734 = vst [vmem:[#allocation3 + $0x40] sm:$0xff] %v1718
        %1735 = vst [vmem:[#allocation3 + $0x48] sm:$0xff] %v1719
        %1736 = vst [vmem:[#allocation3 + $0x50] sm:$0xff] %v1720
        %1737 = vst [vmem:[#allocation3 + $0x58] sm:$0xff] %v1721
        %1738 = vst [vmem:[#allocation3 + $0x60] sm:$0xff] %v1722
        %1739 = vst [vmem:[#allocation3 + $0x68] sm:$0xff] %v1723
        %1740 = vst [vmem:[#allocation3 + $0x70] sm:$0xff] %v1724
        %1741 = vst [vmem:[#allocation3 + $0x78] sm:$0xff] %v1725
        // Predicated region
        $region53: #{tpu_custom_call.1} parent=35 // pred_check
          %p1742 = pneg %p417
        $region54: #{tpu_custom_call.1} parent=35 // pred_check_branch
          %1744 = sbr.rel (%p1742) target = $region56
        $region55: #{tpu_custom_call.1} parent=35 // pred_region
          %v1745 = vld [vmem:[#allocation3] sm:$0xff]
          %v1746 = vld [vmem:[#allocation3 + $0x8] sm:$0xff]
          %v1747 = vld [vmem:[#allocation3 + $0x10] sm:$0xff]
          %v1748 = vld [vmem:[#allocation3 + $0x18] sm:$0xff]
          %v1749 = vld [vmem:[#allocation3 + $0x20] sm:$0xff]
          %v1750 = vld [vmem:[#allocation3 + $0x28] sm:$0xff]
          %v1751 = vld [vmem:[#allocation3 + $0x30] sm:$0xff]
          %v1752 = vld [vmem:[#allocation3 + $0x38] sm:$0xff]
          %v1753 = vld [vmem:[#allocation3 + $0x40] sm:$0xff]
          %v1754 = vld [vmem:[#allocation3 + $0x48] sm:$0xff]
          %v1755 = vld [vmem:[#allocation3 + $0x50] sm:$0xff]
          %v1756 = vld [vmem:[#allocation3 + $0x58] sm:$0xff]
          %v1757 = vld [vmem:[#allocation3 + $0x60] sm:$0xff]
          %v1758 = vld [vmem:[#allocation3 + $0x68] sm:$0xff]
          %v1759 = vld [vmem:[#allocation3 + $0x70] sm:$0xff]
          %v1760 = vld [vmem:[#allocation3 + $0x78] sm:$0xff]
          %1777 = vrot.lane.b32.xlu0 %v1745, 120
          %v1778 = vpop.permute.xlu0 %1777
          %1779 = vrot.lane.b32.xlu0 %v1746, 120
          %v1780 = vpop.permute.xlu0 %1779
          %1781 = vrot.lane.b32.xlu0 %v1747, 120
          %v1782 = vpop.permute.xlu0 %1781
          %1783 = vrot.lane.b32.xlu0 %v1748, 120
          %v1784 = vpop.permute.xlu0 %1783
          %1785 = vrot.lane.b32.xlu0 %v1749, 120
          %v1786 = vpop.permute.xlu0 %1785
          %1787 = vrot.lane.b32.xlu0 %v1750, 120
          %v1788 = vpop.permute.xlu0 %1787
          %1789 = vrot.lane.b32.xlu0 %v1751, 120
          %v1790 = vpop.permute.xlu0 %1789
          %1791 = vrot.lane.b32.xlu0 %v1752, 120
          %v1792 = vpop.permute.xlu0 %1791
          %1793 = vrot.lane.b32.xlu0 %v1753, 120
          %v1794 = vpop.permute.xlu0 %1793
          %1795 = vrot.lane.b32.xlu0 %v1754, 120
          %v1796 = vpop.permute.xlu0 %1795
          %1797 = vrot.lane.b32.xlu0 %v1755, 120
          %v1798 = vpop.permute.xlu0 %1797
          %1799 = vrot.lane.b32.xlu0 %v1756, 120
          %v1800 = vpop.permute.xlu0 %1799
          %1801 = vrot.lane.b32.xlu0 %v1757, 120
          %v1802 = vpop.permute.xlu0 %1801
          %1803 = vrot.lane.b32.xlu0 %v1758, 120
          %v1804 = vpop.permute.xlu0 %1803
          %1805 = vrot.lane.b32.xlu0 %v1759, 120
          %v1806 = vpop.permute.xlu0 %1805
          %1807 = vrot.lane.b32.xlu0 %v1760, 120
          %v1808 = vpop.permute.xlu0 %1807
          %vm1825 = vcmask 7168
          %v1826 = vsel %vm1825, %v1778, 0.0
          %v1827 = vsel %vm1825, %v1780, 0.0
          %v1828 = vadd.f32 %v1826, %v1827
          %v1829 = vsel %vm1825, %v1782, 0.0
          %v1830 = vadd.f32 %v1828, %v1829
          %v1831 = vsel %vm1825, %v1784, 0.0
          %v1832 = vadd.f32 %v1830, %v1831
          %v1833 = vsel %vm1825, %v1786, 0.0
          %v1834 = vadd.f32 %v1832, %v1833
          %v1835 = vsel %vm1825, %v1788, 0.0
          %v1836 = vadd.f32 %v1834, %v1835
          %v1837 = vsel %vm1825, %v1790, 0.0
          %v1838 = vadd.f32 %v1836, %v1837
          %v1839 = vsel %vm1825, %v1792, 0.0
          %v1840 = vadd.f32 %v1838, %v1839
          %v1841 = vsel %vm1825, %v1794, 0.0
          %v1842 = vadd.f32 %v1840, %v1841
          %v1843 = vsel %vm1825, %v1796, 0.0
          %v1844 = vadd.f32 %v1842, %v1843
          %v1845 = vsel %vm1825, %v1798, 0.0
          %v1846 = vadd.f32 %v1844, %v1845
          %v1847 = vsel %vm1825, %v1800, 0.0
          %v1848 = vadd.f32 %v1846, %v1847
          %v1849 = vsel %vm1825, %v1802, 0.0
          %v1850 = vadd.f32 %v1848, %v1849
          %v1851 = vsel %vm1825, %v1804, 0.0
          %v1852 = vadd.f32 %v1850, %v1851
          %v1853 = vsel %vm1825, %v1806, 0.0
          %v1854 = vadd.f32 %v1852, %v1853
          %v1855 = vsel %vm1825, %v1808, 0.0
          %v1856 = vadd.f32 %v1854, %v1855
          %1857 = vadd.xlane.f32.xlu0 %v1856
          %v1858 = vpop.xlane.xlu0 %1857
          %v1859 = vrot.slane %v1858, 4
          %v1860 = vadd.f32 %v1858, %v1859
          %v1861 = vrot.slane %v1860, 2
          %v1862 = vadd.f32 %v1860, %v1861
          %v1863 = vrot.slane %v1862, 1
          %v1864 = vadd.f32 %v1862, %v1863
          %s1865 = vtos %v1864
          %v1866 = vstv %s1865
          %v1867 = vrcp.pop %v1866
          %s1868 = vtos %v1867
          %vm1869 = vcmp.eq.s32.totalorder %v401, %v399
          %vm1870 = vcmp.eq.s32.totalorder %v402, %v399
          %vm1871 = vcmp.eq.s32.totalorder %v403, %v399
          %vm1872 = vcmp.eq.s32.totalorder %v404, %v399
          %vm1873 = vcmp.eq.s32.totalorder %v405, %v399
          %vm1874 = vcmp.eq.s32.totalorder %v406, %v399
          %vm1875 = vcmp.eq.s32.totalorder %v407, %v399
          %vm1876 = vcmp.eq.s32.totalorder %v408, %v399
          %vm1877 = vcmp.eq.s32.totalorder %v409, %v399
          %vm1878 = vcmp.eq.s32.totalorder %v410, %v399
          %vm1879 = vcmp.eq.s32.totalorder %v411, %v399
          %vm1880 = vcmp.eq.s32.totalorder %v412, %v399
          %vm1881 = vcmp.eq.s32.totalorder %v413, %v399
          %vm1882 = vcmp.eq.s32.totalorder %v414, %v399
          %vm1883 = vcmp.eq.s32.totalorder %v415, %v399
          %vm1884 = vcmp.eq.s32.totalorder %v416, %v399
          %vm1885 = vcmp.lt.s32.totalorder %v401, 8
          %vm1886 = vcmp.lt.s32.totalorder %v402, 8
          %vm1887 = vcmp.lt.s32.totalorder %v403, 8
          %vm1888 = vcmp.lt.s32.totalorder %v404, 8
          %vm1889 = vcmp.lt.s32.totalorder %v405, 8
          %vm1890 = vcmp.lt.s32.totalorder %v406, 8
          %vm1891 = vcmp.lt.s32.totalorder %v407, 8
          %vm1892 = vcmp.lt.s32.totalorder %v408, 8
          %vm1893 = vcmp.lt.s32.totalorder %v409, 8
          %vm1894 = vcmp.lt.s32.totalorder %v410, 8
          %vm1895 = vcmp.lt.s32.totalorder %v411, 8
          %vm1896 = vcmp.lt.s32.totalorder %v412, 8
          %vm1897 = vcmp.lt.s32.totalorder %v413, 8
          %vm1898 = vcmp.lt.s32.totalorder %v414, 8
          %vm1899 = vcmp.lt.s32.totalorder %v415, 8
          %vm1900 = vcmp.lt.s32.totalorder %v416, 8
          %v1901 = vsel %vm1885, 1, 0
          %v1902 = vsel %vm1886, 1, 0
          %v1903 = vsel %vm1887, 1, 0
          %v1904 = vsel %vm1888, 1, 0
          %v1905 = vsel %vm1889, 1, 0
          %v1906 = vsel %vm1890, 1, 0
          %v1907 = vsel %vm1891, 1, 0
          %v1908 = vsel %vm1892, 1, 0
          %v1909 = vsel %vm1893, 1, 0
          %v1910 = vsel %vm1894, 1, 0
          %v1911 = vsel %vm1895, 1, 0
          %v1912 = vsel %vm1896, 1, 0
          %v1913 = vsel %vm1897, 1, 0
          %v1914 = vsel %vm1898, 1, 0
          %v1915 = vsel %vm1899, 1, 0
          %v1916 = vsel %vm1900, 1, 0
          %vm1917 = vcmp.eq.s32.totalorder %v1901, 1
          %vm1918 = vcmp.eq.s32.totalorder %v1902, 1
          %vm1919 = vcmp.eq.s32.totalorder %v1903, 1
          %vm1920 = vcmp.eq.s32.totalorder %v1904, 1
          %vm1921 = vcmp.eq.s32.totalorder %v1905, 1
          %vm1922 = vcmp.eq.s32.totalorder %v1906, 1
          %vm1923 = vcmp.eq.s32.totalorder %v1907, 1
          %vm1924 = vcmp.eq.s32.totalorder %v1908, 1
          %vm1925 = vcmp.eq.s32.totalorder %v1909, 1
          %vm1926 = vcmp.eq.s32.totalorder %v1910, 1
          %vm1927 = vcmp.eq.s32.totalorder %v1911, 1
          %vm1928 = vcmp.eq.s32.totalorder %v1912, 1
          %vm1929 = vcmp.eq.s32.totalorder %v1913, 1
          %vm1930 = vcmp.eq.s32.totalorder %v1914, 1
          %vm1931 = vcmp.eq.s32.totalorder %v1915, 1
          %vm1932 = vcmp.eq.s32.totalorder %v1916, 1
          %vm1933 = vmand %vm1869, %vm1917
          %vm1934 = vmand %vm1870, %vm1918
          %vm1935 = vmand %vm1871, %vm1919
          %vm1936 = vmand %vm1872, %vm1920
          %vm1937 = vmand %vm1873, %vm1921
          %vm1938 = vmand %vm1874, %vm1922
          %vm1939 = vmand %vm1875, %vm1923
          %vm1940 = vmand %vm1876, %vm1924
          %vm1941 = vmand %vm1877, %vm1925
          %vm1942 = vmand %vm1878, %vm1926
          %vm1943 = vmand %vm1879, %vm1927
          %vm1944 = vmand %vm1880, %vm1928
          %vm1945 = vmand %vm1881, %vm1929
          %vm1946 = vmand %vm1882, %vm1930
          %vm1947 = vmand %vm1883, %vm1931
          %vm1948 = vmand %vm1884, %vm1932
          %v1949 = vsel %vm1933, 1, 0
          %v1950 = vsel %vm1934, 1, 0
          %v1951 = vsel %vm1935, 1, 0
          %v1952 = vsel %vm1936, 1, 0
          %v1953 = vsel %vm1937, 1, 0
          %v1954 = vsel %vm1938, 1, 0
          %v1955 = vsel %vm1939, 1, 0
          %v1956 = vsel %vm1940, 1, 0
          %v1957 = vsel %vm1941, 1, 0
          %v1958 = vsel %vm1942, 1, 0
          %v1959 = vsel %vm1943, 1, 0
          %v1960 = vsel %vm1944, 1, 0
          %v1961 = vsel %vm1945, 1, 0
          %v1962 = vsel %vm1946, 1, 0
          %v1963 = vsel %vm1947, 1, 0
          %v1964 = vsel %vm1948, 1, 0
          %v1965 = vcvt.s32.f32 %v1949
          %v1966 = vcvt.s32.f32 %v1950
          %v1967 = vcvt.s32.f32 %v1951
          %v1968 = vcvt.s32.f32 %v1952
          %v1969 = vcvt.s32.f32 %v1953
          %v1970 = vcvt.s32.f32 %v1954
          %v1971 = vcvt.s32.f32 %v1955
          %v1972 = vcvt.s32.f32 %v1956
          %v1973 = vcvt.s32.f32 %v1957
          %v1974 = vcvt.s32.f32 %v1958
          %v1975 = vcvt.s32.f32 %v1959
          %v1976 = vcvt.s32.f32 %v1960
          %v1977 = vcvt.s32.f32 %v1961
          %v1978 = vcvt.s32.f32 %v1962
          %v1979 = vcvt.s32.f32 %v1963
          %v1980 = vcvt.s32.f32 %v1964
          %vm1981 = vcmp.lt.s32.totalorder %v399, 8
          %v1982 = vsel %vm1981, 1, 0
          %v1983 = vcvt.s32.f32 %v1982
          %v1984 = vmul.f32 %v1745, %v1983
          %v1985 = vmul.f32 %v1746, %v1983
          %v1986 = vmul.f32 %v1747, %v1983
          %v1987 = vmul.f32 %v1748, %v1983
          %v1988 = vmul.f32 %v1749, %v1983
          %v1989 = vmul.f32 %v1750, %v1983
          %v1990 = vmul.f32 %v1751, %v1983
          %v1991 = vmul.f32 %v1752, %v1983
          %v1992 = vmul.f32 %v1753, %v1983
          %v1993 = vmul.f32 %v1754, %v1983
          %v1994 = vmul.f32 %v1755, %v1983
          %v1995 = vmul.f32 %v1756, %v1983
          %v1996 = vmul.f32 %v1757, %v1983
          %v1997 = vmul.f32 %v1758, %v1983
          %v1998 = vmul.f32 %v1759, %v1983
          %v1999 = vmul.f32 %v1760, %v1983
          %v2000 = vmul.f32 %v1984, %v1965
          %v2001 = vmul.f32 %v1985, %v1966
          %v2002 = vmul.f32 %v1986, %v1967
          %v2003 = vmul.f32 %v1987, %v1968
          %v2004 = vmul.f32 %v1988, %v1969
          %v2005 = vmul.f32 %v1989, %v1970
          %v2006 = vmul.f32 %v1990, %v1971
          %v2007 = vmul.f32 %v1991, %v1972
          %v2008 = vmul.f32 %v1992, %v1973
          %v2009 = vmul.f32 %v1993, %v1974
          %v2010 = vmul.f32 %v1994, %v1975
          %v2011 = vmul.f32 %v1995, %v1976
          %v2012 = vmul.f32 %v1996, %v1977
          %v2013 = vmul.f32 %v1997, %v1978
          %v2014 = vmul.f32 %v1998, %v1979
          %v2015 = vmul.f32 %v1999, %v1980
          %v2016 = vadd.f32 %v2000, %v2001
          %v2017 = vadd.f32 %v2016, %v2002
          %v2018 = vadd.f32 %v2017, %v2003
          %v2019 = vadd.f32 %v2018, %v2004
          %v2020 = vadd.f32 %v2019, %v2005
          %v2021 = vadd.f32 %v2020, %v2006
          %v2022 = vadd.f32 %v2021, %v2007
          %v2023 = vadd.f32 %v2022, %v2008
          %v2024 = vadd.f32 %v2023, %v2009
          %v2025 = vadd.f32 %v2024, %v2010
          %v2026 = vadd.f32 %v2025, %v2011
          %v2027 = vadd.f32 %v2026, %v2012
          %v2028 = vadd.f32 %v2027, %v2013
          %v2029 = vadd.f32 %v2028, %v2014
          %v2030 = vadd.f32 %v2029, %v2015
          %2031 = vadd.xlane.f32.xlu0 %v2030
          %v2032 = vpop.xlane.xlu0 %2031
          %v2033 = vrot.slane %v2032, 4
          %v2034 = vadd.f32 %v2032, %v2033
          %v2035 = vrot.slane %v2034, 2
          %v2036 = vadd.f32 %v2034, %v2035
          %v2037 = vrot.slane %v2036, 1
          %v2038 = vadd.f32 %v2036, %v2037
          %s2039 = vtos %v2038
          %v2040 = vmul.f32 %v1745, %v1745
          %v2041 = vmul.f32 %v1746, %v1746
          %v2042 = vmul.f32 %v1747, %v1747
          %v2043 = vmul.f32 %v1748, %v1748
          %v2044 = vmul.f32 %v1749, %v1749
          %v2045 = vmul.f32 %v1750, %v1750
          %v2046 = vmul.f32 %v1751, %v1751
          %v2047 = vmul.f32 %v1752, %v1752
          %v2048 = vmul.f32 %v1753, %v1753
          %v2049 = vmul.f32 %v1754, %v1754
          %v2050 = vmul.f32 %v1755, %v1755
          %v2051 = vmul.f32 %v1756, %v1756
          %v2052 = vmul.f32 %v1757, %v1757
          %v2053 = vmul.f32 %v1758, %v1758
          %v2054 = vmul.f32 %v1759, %v1759
          %v2055 = vmul.f32 %v1760, %v1760
          %2072 = vrot.lane.b32.xlu0 %v2040, 120
          %v2073 = vpop.permute.xlu0 %2072
          %2074 = vrot.lane.b32.xlu0 %v2041, 120
          %v2075 = vpop.permute.xlu0 %2074
          %2076 = vrot.lane.b32.xlu0 %v2042, 120
          %v2077 = vpop.permute.xlu0 %2076
          %2078 = vrot.lane.b32.xlu0 %v2043, 120
          %v2079 = vpop.permute.xlu0 %2078
          %2080 = vrot.lane.b32.xlu0 %v2044, 120
          %v2081 = vpop.permute.xlu0 %2080
          %2082 = vrot.lane.b32.xlu0 %v2045, 120
          %v2083 = vpop.permute.xlu0 %2082
          %2084 = vrot.lane.b32.xlu0 %v2046, 120
          %v2085 = vpop.permute.xlu0 %2084
          %2086 = vrot.lane.b32.xlu0 %v2047, 120
          %v2087 = vpop.permute.xlu0 %2086
          %2088 = vrot.lane.b32.xlu0 %v2048, 120
          %v2089 = vpop.permute.xlu0 %2088
          %2090 = vrot.lane.b32.xlu0 %v2049, 120
          %v2091 = vpop.permute.xlu0 %2090
          %2092 = vrot.lane.b32.xlu0 %v2050, 120
          %v2093 = vpop.permute.xlu0 %2092
          %2094 = vrot.lane.b32.xlu0 %v2051, 120
          %v2095 = vpop.permute.xlu0 %2094
          %2096 = vrot.lane.b32.xlu0 %v2052, 120
          %v2097 = vpop.permute.xlu0 %2096
          %2098 = vrot.lane.b32.xlu0 %v2053, 120
          %v2099 = vpop.permute.xlu0 %2098
          %2100 = vrot.lane.b32.xlu0 %v2054, 120
          %v2101 = vpop.permute.xlu0 %2100
          %2102 = vrot.lane.b32.xlu0 %v2055, 120
          %v2103 = vpop.permute.xlu0 %2102
          %v2120 = vsel %vm1825, %v2073, 0.0
          %v2121 = vsel %vm1825, %v2075, 0.0
          %v2122 = vadd.f32 %v2120, %v2121
          %v2123 = vsel %vm1825, %v2077, 0.0
          %v2124 = vadd.f32 %v2122, %v2123
          %v2125 = vsel %vm1825, %v2079, 0.0
          %v2126 = vadd.f32 %v2124, %v2125
          %v2127 = vsel %vm1825, %v2081, 0.0
          %v2128 = vadd.f32 %v2126, %v2127
          %v2129 = vsel %vm1825, %v2083, 0.0
          %v2130 = vadd.f32 %v2128, %v2129
          %v2131 = vsel %vm1825, %v2085, 0.0
          %v2132 = vadd.f32 %v2130, %v2131
          %v2133 = vsel %vm1825, %v2087, 0.0
          %v2134 = vadd.f32 %v2132, %v2133
          %v2135 = vsel %vm1825, %v2089, 0.0
          %v2136 = vadd.f32 %v2134, %v2135
          %v2137 = vsel %vm1825, %v2091, 0.0
          %v2138 = vadd.f32 %v2136, %v2137
          %v2139 = vsel %vm1825, %v2093, 0.0
          %v2140 = vadd.f32 %v2138, %v2139
          %v2141 = vsel %vm1825, %v2095, 0.0
          %v2142 = vadd.f32 %v2140, %v2141
          %v2143 = vsel %vm1825, %v2097, 0.0
          %v2144 = vadd.f32 %v2142, %v2143
          %v2145 = vsel %vm1825, %v2099, 0.0
          %v2146 = vadd.f32 %v2144, %v2145
          %v2147 = vsel %vm1825, %v2101, 0.0
          %v2148 = vadd.f32 %v2146, %v2147
          %v2149 = vsel %vm1825, %v2103, 0.0
          %v2150 = vadd.f32 %v2148, %v2149
          %2151 = vadd.xlane.f32.xlu0 %v2150
          %v2152 = vpop.xlane.xlu0 %2151
          %v2153 = vrot.slane %v2152, 4
          %v2154 = vadd.f32 %v2152, %v2153
          %v2155 = vrot.slane %v2154, 2
          %v2156 = vadd.f32 %v2154, %v2155
          %v2157 = vrot.slane %v2156, 1
          %v2158 = vadd.f32 %v2156, %v2157
          %s2159 = vtos %v2158
          %s2160 = smul.f32 %s2159, %s1868
          %s2161 = ssub.f32 %s2039, %s2160
          %s2162 = ssub.f32 0.0, %s2161
          %s2163 = smul.f32 %s2162, %s1868
          %v2164 = vsub.f32 1.0, %v1965
          %v2165 = vsub.f32 1.0, %v1966
          %v2166 = vsub.f32 1.0, %v1967
          %v2167 = vsub.f32 1.0, %v1968
          %v2168 = vsub.f32 1.0, %v1969
          %v2169 = vsub.f32 1.0, %v1970
          %v2170 = vsub.f32 1.0, %v1971
          %v2171 = vsub.f32 1.0, %v1972
          %v2172 = vsub.f32 1.0, %v1973
          %v2173 = vsub.f32 1.0, %v1974
          %v2174 = vsub.f32 1.0, %v1975
          %v2175 = vsub.f32 1.0, %v1976
          %v2176 = vsub.f32 1.0, %v1977
          %v2177 = vsub.f32 1.0, %v1978
          %v2178 = vsub.f32 1.0, %v1979
          %v2179 = vsub.f32 1.0, %v1980
          %v2180 = vmul.f32 %v1984, %v2164
          %v2181 = vmul.f32 %v1985, %v2165
          %v2182 = vmul.f32 %v1986, %v2166
          %v2183 = vmul.f32 %v1987, %v2167
          %v2184 = vmul.f32 %v1988, %v2168
          %v2185 = vmul.f32 %v1989, %v2169
          %v2186 = vmul.f32 %v1990, %v2170
          %v2187 = vmul.f32 %v1991, %v2171
          %v2188 = vmul.f32 %v1992, %v2172
          %v2189 = vmul.f32 %v1993, %v2173
          %v2190 = vmul.f32 %v1994, %v2174
          %v2191 = vmul.f32 %v1995, %v2175
          %v2192 = vmul.f32 %v1996, %v2176
          %v2193 = vmul.f32 %v1997, %v2177
          %v2194 = vmul.f32 %v1998, %v2178
          %v2195 = vmul.f32 %v1999, %v2179
          %2196 = vadd.xlane.f32.xlu0 %v2180
          %v2197 = vpop.xlane.xlu0 %2196
          %2198 = vadd.xlane.f32.xlu0 %v2181
          %v2199 = vpop.xlane.xlu0 %2198
          %2200 = vadd.xlane.f32.xlu0 %v2182
          %v2201 = vpop.xlane.xlu0 %2200
          %2202 = vadd.xlane.f32.xlu0 %v2183
          %v2203 = vpop.xlane.xlu0 %2202
          %2204 = vadd.xlane.f32.xlu0 %v2184
          %v2205 = vpop.xlane.xlu0 %2204
          %2206 = vadd.xlane.f32.xlu0 %v2185
          %v2207 = vpop.xlane.xlu0 %2206
          %2208 = vadd.xlane.f32.xlu0 %v2186
          %v2209 = vpop.xlane.xlu0 %2208
          %2210 = vadd.xlane.f32.xlu0 %v2187
          %v2211 = vpop.xlane.xlu0 %2210
          %2212 = vadd.xlane.f32.xlu0 %v2188
          %v2213 = vpop.xlane.xlu0 %2212
          %2214 = vadd.xlane.f32.xlu0 %v2189
          %v2215 = vpop.xlane.xlu0 %2214
          %2216 = vadd.xlane.f32.xlu0 %v2190
          %v2217 = vpop.xlane.xlu0 %2216
          %2218 = vadd.xlane.f32.xlu0 %v2191
          %v2219 = vpop.xlane.xlu0 %2218
          %2220 = vadd.xlane.f32.xlu0 %v2192
          %v2221 = vpop.xlane.xlu0 %2220
          %2222 = vadd.xlane.f32.xlu0 %v2193
          %v2223 = vpop.xlane.xlu0 %2222
          %2224 = vadd.xlane.f32.xlu0 %v2194
          %v2225 = vpop.xlane.xlu0 %2224
          %2226 = vadd.xlane.f32.xlu0 %v2195
          %v2227 = vpop.xlane.xlu0 %2226
          %v2228 = vrsqrt.pop %v2197
          %v2229 = vmul.f32 %v2197, %v2228
          %vm2230 = vcmp.eq.f32.partialorder %v2197, inf
          %v2231 = vsel %vm2230, %v2197, %v2229
          %vm2232 = vcmp.eq.f32.partialorder %v2197, 0.0
          %v2233 = vand.u32 %v2197, 2147483648
          %v2234 = vsel %vm2232, %v2233, %v2231
          %v2235 = vrsqrt.pop %v2199
          %v2236 = vmul.f32 %v2199, %v2235
          %vm2237 = vcmp.eq.f32.partialorder %v2199, inf
          %v2238 = vsel %vm2237, %v2199, %v2236
          %vm2239 = vcmp.eq.f32.partialorder %v2199, 0.0
          %v2240 = vand.u32 %v2199, 2147483648
          %v2241 = vsel %vm2239, %v2240, %v2238
          %v2242 = vrsqrt.pop %v2201
          %v2243 = vmul.f32 %v2201, %v2242
          %vm2244 = vcmp.eq.f32.partialorder %v2201, inf
          %v2245 = vsel %vm2244, %v2201, %v2243
          %vm2246 = vcmp.eq.f32.partialorder %v2201, 0.0
          %v2247 = vand.u32 %v2201, 2147483648
          %v2248 = vsel %vm2246, %v2247, %v2245
          %v2249 = vrsqrt.pop %v2203
          %v2250 = vmul.f32 %v2203, %v2249
          %vm2251 = vcmp.eq.f32.partialorder %v2203, inf
          %v2252 = vsel %vm2251, %v2203, %v2250
          %vm2253 = vcmp.eq.f32.partialorder %v2203, 0.0
          %v2254 = vand.u32 %v2203, 2147483648
          %v2255 = vsel %vm2253, %v2254, %v2252
          %v2256 = vrsqrt.pop %v2205
          %v2257 = vmul.f32 %v2205, %v2256
          %vm2258 = vcmp.eq.f32.partialorder %v2205, inf
          %v2259 = vsel %vm2258, %v2205, %v2257
          %vm2260 = vcmp.eq.f32.partialorder %v2205, 0.0
          %v2261 = vand.u32 %v2205, 2147483648
          %v2262 = vsel %vm2260, %v2261, %v2259
          %v2263 = vrsqrt.pop %v2207
          %v2264 = vmul.f32 %v2207, %v2263
          %vm2265 = vcmp.eq.f32.partialorder %v2207, inf
          %v2266 = vsel %vm2265, %v2207, %v2264
          %vm2267 = vcmp.eq.f32.partialorder %v2207, 0.0
          %v2268 = vand.u32 %v2207, 2147483648
          %v2269 = vsel %vm2267, %v2268, %v2266
          %v2270 = vrsqrt.pop %v2209
          %v2271 = vmul.f32 %v2209, %v2270
          %vm2272 = vcmp.eq.f32.partialorder %v2209, inf
          %v2273 = vsel %vm2272, %v2209, %v2271
          %vm2274 = vcmp.eq.f32.partialorder %v2209, 0.0
          %v2275 = vand.u32 %v2209, 2147483648
          %v2276 = vsel %vm2274, %v2275, %v2273
          %v2277 = vrsqrt.pop %v2211
          %v2278 = vmul.f32 %v2211, %v2277
          %vm2279 = vcmp.eq.f32.partialorder %v2211, inf
          %v2280 = vsel %vm2279, %v2211, %v2278
          %vm2281 = vcmp.eq.f32.partialorder %v2211, 0.0
          %v2282 = vand.u32 %v2211, 2147483648
          %v2283 = vsel %vm2281, %v2282, %v2280
          %v2284 = vrsqrt.pop %v2213
          %v2285 = vmul.f32 %v2213, %v2284
          %vm2286 = vcmp.eq.f32.partialorder %v2213, inf
          %v2287 = vsel %vm2286, %v2213, %v2285
          %vm2288 = vcmp.eq.f32.partialorder %v2213, 0.0
          %v2289 = vand.u32 %v2213, 2147483648
          %v2290 = vsel %vm2288, %v2289, %v2287
          %v2291 = vrsqrt.pop %v2215
          %v2292 = vmul.f32 %v2215, %v2291
          %vm2293 = vcmp.eq.f32.partialorder %v2215, inf
          %v2294 = vsel %vm2293, %v2215, %v2292
          %vm2295 = vcmp.eq.f32.partialorder %v2215, 0.0
          %v2296 = vand.u32 %v2215, 2147483648
          %v2297 = vsel %vm2295, %v2296, %v2294
          %v2298 = vrsqrt.pop %v2217
          %v2299 = vmul.f32 %v2217, %v2298
          %vm2300 = vcmp.eq.f32.partialorder %v2217, inf
          %v2301 = vsel %vm2300, %v2217, %v2299
          %vm2302 = vcmp.eq.f32.partialorder %v2217, 0.0
          %v2303 = vand.u32 %v2217, 2147483648
          %v2304 = vsel %vm2302, %v2303, %v2301
          %v2305 = vrsqrt.pop %v2219
          %v2306 = vmul.f32 %v2219, %v2305
          %vm2307 = vcmp.eq.f32.partialorder %v2219, inf
          %v2308 = vsel %vm2307, %v2219, %v2306
          %vm2309 = vcmp.eq.f32.partialorder %v2219, 0.0
          %v2310 = vand.u32 %v2219, 2147483648
          %v2311 = vsel %vm2309, %v2310, %v2308
          %v2312 = vrsqrt.pop %v2221
          %v2313 = vmul.f32 %v2221, %v2312
          %vm2314 = vcmp.eq.f32.partialorder %v2221, inf
          %v2315 = vsel %vm2314, %v2221, %v2313
          %vm2316 = vcmp.eq.f32.partialorder %v2221, 0.0
          %v2317 = vand.u32 %v2221, 2147483648
          %v2318 = vsel %vm2316, %v2317, %v2315
          %v2319 = vrsqrt.pop %v2223
          %v2320 = vmul.f32 %v2223, %v2319
          %vm2321 = vcmp.eq.f32.partialorder %v2223, inf
          %v2322 = vsel %vm2321, %v2223, %v2320
          %vm2323 = vcmp.eq.f32.partialorder %v2223, 0.0
          %v2324 = vand.u32 %v2223, 2147483648
          %v2325 = vsel %vm2323, %v2324, %v2322
          %v2326 = vrsqrt.pop %v2225
          %v2327 = vmul.f32 %v2225, %v2326
          %vm2328 = vcmp.eq.f32.partialorder %v2225, inf
          %v2329 = vsel %vm2328, %v2225, %v2327
          %vm2330 = vcmp.eq.f32.partialorder %v2225, 0.0
          %v2331 = vand.u32 %v2225, 2147483648
          %v2332 = vsel %vm2330, %v2331, %v2329
          %v2333 = vrsqrt.pop %v2227
          %v2334 = vmul.f32 %v2227, %v2333
          %vm2335 = vcmp.eq.f32.partialorder %v2227, inf
          %v2336 = vsel %vm2335, %v2227, %v2334
          %vm2337 = vcmp.eq.f32.partialorder %v2227, 0.0
          %v2338 = vand.u32 %v2227, 2147483648
          %v2339 = vsel %vm2337, %v2338, %v2336
          %v2340 = vadd.f32 %v2234, 1e-15
          %v2341 = vadd.f32 %v2241, 1e-15
          %v2342 = vadd.f32 %v2248, 1e-15
          %v2343 = vadd.f32 %v2255, 1e-15
          %v2344 = vadd.f32 %v2262, 1e-15
          %v2345 = vadd.f32 %v2269, 1e-15
          %v2346 = vadd.f32 %v2276, 1e-15
          %v2347 = vadd.f32 %v2283, 1e-15
          %v2348 = vadd.f32 %v2290, 1e-15
          %v2349 = vadd.f32 %v2297, 1e-15
          %v2350 = vadd.f32 %v2304, 1e-15
          %v2351 = vadd.f32 %v2311, 1e-15
          %v2352 = vadd.f32 %v2318, 1e-15
          %v2353 = vadd.f32 %v2325, 1e-15
          %v2354 = vadd.f32 %v2332, 1e-15
          %v2355 = vadd.f32 %v2339, 1e-15
          %v2356 = vrcp.pop %v2340
          %v2357 = vrcp.pop %v2341
          %v2358 = vrcp.pop %v2342
          %v2359 = vrcp.pop %v2343
          %v2360 = vrcp.pop %v2344
          %v2361 = vrcp.pop %v2345
          %v2362 = vrcp.pop %v2346
          %v2363 = vrcp.pop %v2347
          %v2364 = vrcp.pop %v2348
          %v2365 = vrcp.pop %v2349
          %v2366 = vrcp.pop %v2350
          %v2367 = vrcp.pop %v2351
          %v2368 = vrcp.pop %v2352
          %v2369 = vrcp.pop %v2353
          %v2370 = vrcp.pop %v2354
          %v2371 = vrcp.pop %v2355
          %v2372 = vmul.f32 %v2180, %v2356
          %v2373 = vmul.f32 %v2181, %v2357
          %v2374 = vmul.f32 %v2182, %v2358
          %v2375 = vmul.f32 %v2183, %v2359
          %v2376 = vmul.f32 %v2184, %v2360
          %v2377 = vmul.f32 %v2185, %v2361
          %v2378 = vmul.f32 %v2186, %v2362
          %v2379 = vmul.f32 %v2187, %v2363
          %v2380 = vmul.f32 %v2188, %v2364
          %v2381 = vmul.f32 %v2189, %v2365
          %v2382 = vmul.f32 %v2190, %v2366
          %v2383 = vmul.f32 %v2191, %v2367
          %v2384 = vmul.f32 %v2192, %v2368
          %v2385 = vmul.f32 %v2193, %v2369
          %v2386 = vmul.f32 %v2194, %v2370
          %v2387 = vmul.f32 %v2195, %v2371
          %2388 = vxpose.xlu0.b32.start [1/16] %v2356, 128
          %2389 = vxpose.xlu0.b32.cont [2/16] %v2357, 128
          %2390 = vxpose.xlu0.b32.cont [3/16] %v2358, 128
          %2391 = vxpose.xlu0.b32.cont [4/16] %v2359, 128
          %2392 = vxpose.xlu0.b32.cont [5/16] %v2360, 128
          %2393 = vxpose.xlu0.b32.cont [6/16] %v2361, 128
          %2394 = vxpose.xlu0.b32.cont [7/16] %v2362, 128
          %2395 = vxpose.xlu0.b32.cont [8/16] %v2363, 128
          %2396 = vxpose.xlu0.b32.cont [9/16] %v2364, 128
          %2397 = vxpose.xlu0.b32.cont [10/16] %v2365, 128
          %2398 = vxpose.xlu0.b32.cont [11/16] %v2366, 128
          %2399 = vxpose.xlu0.b32.cont [12/16] %v2367, 128
          %2400 = vxpose.xlu0.b32.cont [13/16] %v2368, 128
          %2401 = vxpose.xlu0.b32.cont [14/16] %v2369, 128
          %2402 = vxpose.xlu0.b32.cont [15/16] %v2370, 128
          %2403 = vxpose.xlu0.b32.end [16/16] %v2371, 128
          %v2404 = vpop.trf.xlu0
          %v2405 = vpop.trf.xlu0
          %v2406 = vpop.trf.xlu0
          %v2407 = vpop.trf.xlu0
          %v2408 = vpop.trf.xlu0
          %v2409 = vpop.trf.xlu0
          %v2410 = vpop.trf.xlu0
          %v2411 = vpop.trf.xlu0
          %v2412 = vpop.trf.xlu0
          %v2413 = vpop.trf.xlu0
          %v2414 = vpop.trf.xlu0
          %v2415 = vpop.trf.xlu0
          %v2416 = vpop.trf.xlu0
          %v2417 = vpop.trf.xlu0
          %v2418 = vpop.trf.xlu0
          %v2419 = vpop.trf.xlu0
          %v2420 = vlaneseq
          %v2421 = vshrl.u32 %v2420, 7
          %v2422 = vsub.s32 0, %v2421
          %v2423 = vrot.slane %v2404, %v2422
          %v2424 = vmul.f32 %v2372, %v2423
          %v2425 = vmul.f32 %v2373, %v2423
          %v2426 = vmul.f32 %v2374, %v2423
          %v2427 = vmul.f32 %v2375, %v2423
          %v2428 = vmul.f32 %v2376, %v2423
          %v2429 = vmul.f32 %v2377, %v2423
          %v2430 = vmul.f32 %v2378, %v2423
          %v2431 = vmul.f32 %v2379, %v2423
          %v2432 = vmul.f32 %v2380, %v2423
          %v2433 = vmul.f32 %v2381, %v2423
          %v2434 = vmul.f32 %v2382, %v2423
          %v2435 = vmul.f32 %v2383, %v2423
          %v2436 = vmul.f32 %v2384, %v2423
          %v2437 = vmul.f32 %v2385, %v2423
          %v2438 = vmul.f32 %v2386, %v2423
          %v2439 = vmul.f32 %v2387, %v2423
          %2440 = vst [vmem:[%s384] sm:$0xff] %v2424
          %2441 = vst [vmem:[%s384 + $0x8] sm:$0xff] %v2425
          %2442 = vst [vmem:[%s384 + $0x10] sm:$0xff] %v2426
          %2443 = vst [vmem:[%s384 + $0x18] sm:$0xff] %v2427
          %2444 = vst [vmem:[%s384 + $0x20] sm:$0xff] %v2428
          %2445 = vst [vmem:[%s384 + $0x28] sm:$0xff] %v2429
          %2446 = vst [vmem:[%s384 + $0x30] sm:$0xff] %v2430
          %2447 = vst [vmem:[%s384 + $0x38] sm:$0xff] %v2431
          %2448 = vst [vmem:[%s384 + $0x40] sm:$0xff] %v2432
          %2449 = vst [vmem:[%s384 + $0x48] sm:$0xff] %v2433
          %2450 = vst [vmem:[%s384 + $0x50] sm:$0xff] %v2434
          %2451 = vst [vmem:[%s384 + $0x58] sm:$0xff] %v2435
          %2452 = vst [vmem:[%s384 + $0x60] sm:$0xff] %v2436
          %2453 = vst [vmem:[%s384 + $0x68] sm:$0xff] %v2437
          %2454 = vst [vmem:[%s384 + $0x70] sm:$0xff] %v2438
          %2455 = vst [vmem:[%s384 + $0x78] sm:$0xff] %v2439
          %v2456 = vld [vmem:[%s390] sm:$0x1]
          %vm2457 = vcmp.eq.s32.totalorder %v399, 0
          %v2458 = vstv %s2163
          %v2459 = vsel %vm2457, %v2458, 0.0
          %v2460 = vadd.f32 %v2456, %v2459
          %2461 = vst [vmem:[%s390] sm:$0x1] %v2460
        $region56: #{tpu_custom_call.1} parent=35 // pred_fallthru
          _
        %s2462 = sand.u32 %s147, 1
        %s2463 = scalar_lea.sflag [#allocation6], %s2462
        %s2464 = sand.u32 %s147, 1
        %s2465 = smul.addr %s2464, 16
        %s2466 = scalar_lea.vmem [#allocation10], %s2465
        %p2467 = scmp.lt.s32.totalorder %s35, 1
        %s2468 = scalar_select %p2467, %s35, 1
        %s2469 = smul.addr %s2468, 16
        %s2470 = smul.addr %s2469, 8
        %s2471 = scalar_lea.vmem %s5, %s2470
        %s2472 = sand.u32 %s31, 1
        %s2473 = scalar_lea.sflag [#allocation12], %s2472
        %s2474 = sand.u32 %s199, 1
        %s2475 = smul.addr %s2474, 128
        %s2476 = scalar_lea.vmem [#allocation11], %s2475
        %s2477 = sand.u32 %s31, 1
        %s2478 = scalar_lea.sflag [#allocation12], %s2477
        %s2479 = sand.u32 %s225, 1
        %s2480 = scalar_lea.vmem [#allocation13], %s2479
        // Predicated region
        $region57: #{tpu_custom_call.1} parent=35 // pred_check
          %p2481 = pneg %p157
        $region58: #{tpu_custom_call.1} parent=35 // pred_check_branch
          %2483 = sbr.rel (%p2481) target = $region60
        $region59: #{tpu_custom_call.1} parent=35 // pred_region
          %s2485 = ssub.s32 256, 256
          %2486 = vsyncadd %s2463, %s2485
          %s2487 = smul.addr %s35, 2
          %s2488 = smul.addr %s2487, 128
          %s2489 = scalar_lea.hbm %s4, %s2488
          %s2490 = sshll.u32 %s2466, 4
          %s2491 = int_to_ptr.vmem [resolvable:$true] %s2490
          %2496 = dma.vmem_to_hbm [thread:$0]  %s2491, 256, %s2489, %s2463, 128, 128, 8
        $region60: #{tpu_custom_call.1} parent=35 // pred_fallthru
          _
        // Predicated region
        $region61: #{tpu_custom_call.1} parent=35 // pred_check
          %p2497 = pneg %p183
        $region62: #{tpu_custom_call.1} parent=35 // pred_check_branch
          %2499 = sbr.rel (%p2497) target = $region64
        $region63: #{tpu_custom_call.1} parent=35 // pred_region
          _
        $region64: #{tpu_custom_call.1} parent=35 // pred_fallthru
          _
        // Predicated region
        $region65: #{tpu_custom_call.1} parent=35 // pred_check
          %p2500 = pneg %p209
        $region66: #{tpu_custom_call.1} parent=35 // pred_check_branch
          %2502 = sbr.rel (%p2500) target = $region68
        $region67: #{tpu_custom_call.1} parent=35 // pred_region
          %s2504 = ssub.s32 2048, 2048
          %2505 = vsyncadd %s2473, %s2504
          %s2506 = smul.addr %s35, 16
          %s2507 = smul.addr %s2506, 128
          %s2508 = scalar_lea.hbm %s6, %s2507
          %s2509 = sshll.u32 %s2476, 4
          %s2510 = int_to_ptr.vmem [resolvable:$true] %s2509
          %2515 = dma.vmem_to_hbm [thread:$0]  %s2510, 2048, %s2508, %s2473, 128, 128, 8
        $region68: #{tpu_custom_call.1} parent=35 // pred_fallthru
          _
        // Predicated region
        $region69: #{tpu_custom_call.1} parent=35 // pred_check
          %p2516 = pneg %p235
        $region70: #{tpu_custom_call.1} parent=35 // pred_check_branch
          %2518 = sbr.rel (%p2516) target = $region72
        $region71: #{tpu_custom_call.1} parent=35 // pred_region
          %s2520 = ssub.s32 16, 16
          %2521 = vsyncadd %s2478, %s2520
          %s2522 = smul.addr %s35, 16
          %s2523 = scalar_lea.hbm %s7, %s2522
          %s2525 = sshll.u32 %s2480, 4
          %s2526 = int_to_ptr.vmem [resolvable:$true] %s2525
          %2528 = dma.vmem_to_hbm [thread:$0]  %s2526, 16, %s2523, %s2478
        $region72: #{tpu_custom_call.1} parent=35 // pred_fallthru
          _
      $region36: #{tpu_custom_call.1} parent=5 // pred_fallthru
        _
      %p2529 = scmp.le.s32.totalorder 2, %s26
      // Predicated region
      $region73: #{tpu_custom_call.1} parent=5 // pred_check
        %p2530 = pneg %p2529
      $region74: #{tpu_custom_call.1} parent=5 // pred_check_branch
        %2532 = sbr.rel (%p2530) target = $region76
      $region75: #{tpu_custom_call.1} parent=5 // pred_region
        %s2533 = ssub.s32 %s26, 2
        // Predicated region
        $region77: #{tpu_custom_call.1} parent=75 // pred_check
          %p2534 = pneg %p163
        $region78: #{tpu_custom_call.1} parent=75 // pred_check_branch
          %2536 = sbr.rel (%p2534) target = $region80
        $region79: #{tpu_custom_call.1} parent=75 // pred_region
          %s2537 = sand.u32 %s148, 1
          %s2538 = scalar_lea.sflag [#allocation6], %s2537
          %s2539 = sand.u32 %s148, 1
          %s2540 = smul.addr %s2539, 16
          %s2541 = scalar_lea.vmem [#allocation10], %s2540
          %2542 = dma.done %s2538, 256
        $region80: #{tpu_custom_call.1} parent=75 // pred_fallthru
          _
        // Predicated region
        $region81: #{tpu_custom_call.1} parent=75 // pred_check
          %p2543 = pneg %p189
        $region82: #{tpu_custom_call.1} parent=75 // pred_check_branch
          %2545 = sbr.rel (%p2543) target = $region84
        $region83: #{tpu_custom_call.1} parent=75 // pred_region
          %p2546 = scmp.lt.s32.totalorder %s37, 1
          %s2547 = scalar_select %p2546, %s37, 1
          %s2548 = smul.addr %s2547, 16
          %s2549 = smul.addr %s2548, 8
          %s2550 = scalar_lea.vmem %s5, %s2549
        $region84: #{tpu_custom_call.1} parent=75 // pred_fallthru
          _
        // Predicated region
        $region85: #{tpu_custom_call.1} parent=75 // pred_check
          %p2551 = pneg %p215
        $region86: #{tpu_custom_call.1} parent=75 // pred_check_branch
          %2553 = sbr.rel (%p2551) target = $region88
        $region87: #{tpu_custom_call.1} parent=75 // pred_region
          %s2554 = sand.u32 %s32, 1
          %s2555 = scalar_lea.sflag [#allocation12], %s2554
          %s2556 = sand.u32 %s200, 1
          %s2557 = smul.addr %s2556, 128
          %s2558 = scalar_lea.vmem [#allocation11], %s2557
          %2559 = dma.done %s2555, 2048
        $region88: #{tpu_custom_call.1} parent=75 // pred_fallthru
          _
        // Predicated region
        $region89: #{tpu_custom_call.1} parent=75 // pred_check
          %p2560 = pneg %p241
        $region90: #{tpu_custom_call.1} parent=75 // pred_check_branch
          %2562 = sbr.rel (%p2560) target = $region92
        $region91: #{tpu_custom_call.1} parent=75 // pred_region
          %s2563 = sand.u32 %s32, 1
          %s2564 = scalar_lea.sflag [#allocation12], %s2563
          %s2565 = sand.u32 %s226, 1
          %s2566 = scalar_lea.vmem [#allocation13], %s2565
          %2567 = dma.done %s2564, 16
        $region92: #{tpu_custom_call.1} parent=75 // pred_fallthru
          _
      $region76: #{tpu_custom_call.1} parent=5 // pred_fallthru
        _
    $region6: #{tpu_custom_call.1} parent=1 // loop_footer
      %s30 = sadd.s32 1, %s26
    $region7: #{tpu_custom_call.1} parent=1 // loop_footer_branch
      %25 = sbr.rel target = $region3
    $region8: #{tpu_custom_call.1} parent=1 // loop_exit
      _
    %2568 = vsyncpa [#allocation5], 1
    %s2569 = scalar_lea.sflag [#allocation5], 1
    %2570 = vsyncpa %s2569, 1
    %2571 = vsyncpa [#allocation8], 1
    %s2572 = scalar_lea.sflag [#allocation8], 1
    %2573 = vsyncpa %s2572, 1
    %2574 = vsyncpa [#allocation6], 1
    %s2575 = scalar_lea.sflag [#allocation6], 1
    %2576 = vsyncpa %s2575, 1
    %2577 = vsyncpa [#allocation12], 1
    %s2578 = scalar_lea.sflag [#allocation12], 1
    %2579 = vsyncpa %s2578, 1

</llo_original>
